<compile_context>
chip_gen: v7x
topology: tpu7x:2x2x1
jax: 0.10.0
libtpu: 0.0.40
codegen_flags: <defaults>
</compile_context>

<pallas_src>
import functools

import jax
import jax.numpy as jnp
from jax.experimental import pallas as pl
from jax.experimental.pallas import tpu as pltpu


# ---------------------------------------------------------------------------
# Fused kernel
# ---------------------------------------------------------------------------
def _sage_fused_kernel(*refs, num_layers: int, compute_dtype):
    """refs = (adj_bin, inv_deg, x, [w_stacked, b] * num_layers, out)."""
    adj_ref, inv_deg_ref, x_ref = refs[0], refs[1], refs[2]
    out_ref = refs[-1]

    adj = adj_ref[...]            # (N, N)     bf16, exact 0/1
    inv_deg = inv_deg_ref[...]    # (N, 1)     f32
    x = x_ref[...]                # (N, cpad)  bf16
    h = None
    for li in range(num_layers):
        w_ref = refs[3 + 2 * li]  # (2*cpad, cpad) bf16  == [Wl ; Wr] (BN folded)
        b_ref = refs[4 + 2 * li]  # (1, cpad)      f32

        # Sum over neighbors on the MXU, then mean via f32 inv_deg scaling;
        # the scale is merged with the bf16 cast feeding the next MXU op.
        agg = jnp.dot(adj, x, preferred_element_type=jnp.float32)   # (N, cpad) f32
        agg = (agg * inv_deg).astype(compute_dtype)                 # (N, cpad) bf16

        # Single fused weight GEMM:  [agg | x] @ [Wl ; Wr]  (K = 2*cpad).
        lhs = jnp.concatenate([agg, x], axis=1)                     # (N, 2*cpad) bf16
        h = jnp.dot(lhs, w_ref[...], preferred_element_type=jnp.float32)
        h = h + b_ref[...]                                          # f32 epilogue

        if li < num_layers - 1:
            h = jnp.maximum(h, 0.0)      # ReLU (f32)
            # TODO(synk): F.dropout is identity at inference (training=False).
            x = h.astype(compute_dtype)  # feed next layer's MXU in bf16
    out_ref[...] = h                     # lane-dense (N, cpad) f32 store


# ---------------------------------------------------------------------------
# Host-side one-time preparation: BN/bias folding, Wl/Wr stacking, padding
# ---------------------------------------------------------------------------
def _round_up(v, m):
    return ((v + m - 1) // m) * m


def _padded_channels(params):
    dims = [params[0]["wl"].shape[0]] + [p["wl"].shape[1] for p in params]
    return max(128, _round_up(max(dims), 128))


def fold_bn_stack_pad(params, cpad, compute_dtype, eps):
    """Fold eval-mode BatchNorm1d + bias into weights; stack Wl/Wr along K;
    zero-pad channels to cpad."""
    num_layers = len(params)
    folded = []
    for li, p in enumerate(params):
        wl, wr, b = p["wl"], p["wr"], p["b"]
        if li < num_layers - 1:
            scale = p["gamma"] * jax.lax.rsqrt(p["var"] + eps)       # (1, cout)
            wl = wl * scale
            wr = wr * scale
            b = (b - p["mean"]) * scale + p["beta"]
        cin, cout = wl.shape
        w_stacked = jnp.zeros((2 * cpad, cpad), jnp.float32)
        w_stacked = w_stacked.at[:cin, :cout].set(wl)                # top half: Wl
        w_stacked = w_stacked.at[cpad:cpad + cin, :cout].set(wr)     # bottom: Wr
        b_p = jnp.zeros((1, cpad), jnp.float32).at[:, :cout].set(b)
        folded.append((w_stacked.astype(compute_dtype), b_p))        # bias stays f32
    return folded


# ---------------------------------------------------------------------------
# Pallas wrapper factory: prep once, return a jitted forward()
# ---------------------------------------------------------------------------
def make_sage_forward(params, adj, *, eps=1e-5, compute_dtype=jnp.bfloat16):
    """adj is the (dense) binary adjacency; mean aggregation (1/deg) is done
    inside the kernel in f32."""
    N = adj.shape[0]
    assert N % 8 == 0  # full-array blocks; re-tiling for large N needs (16,128) bf16 tiles
    num_layers = len(params)
    cin0 = params[0]["wl"].shape[0]
    out_channels = params[-1]["wl"].shape[1]
    cpad = _padded_channels(params)

    # ---- one-time host prep (cached; NOT on the per-call path) ----
    adj_bin = (adj > 0).astype(compute_dtype)                          # exact in bf16
    deg = jnp.maximum(adj.astype(jnp.float32).sum(axis=1, keepdims=True), 1.0)
    inv_deg = (1.0 / deg).astype(jnp.float32)                          # (N, 1) f32
    folded = fold_bn_stack_pad(params, cpad, compute_dtype, eps)
    weight_args = [a for wb in folded for a in wb]

    in_specs = [
        pl.BlockSpec((N, N), lambda i: (0, 0)),       # binary adjacency (VMEM resident)
        pl.BlockSpec((N, 1), lambda i: (0, 0)),       # f32 inverse degree
        pl.BlockSpec((N, cpad), lambda i: (0, 0)),    # x (single stream; reused for root term)
    ]
    for _ in range(num_layers):
        in_specs += [
            pl.BlockSpec((2 * cpad, cpad), lambda i: (0, 0)),   # stacked [Wl;Wr]
            pl.BlockSpec((1, cpad), lambda i: (0, 0)),          # folded bias
        ]

    kernel = functools.partial(_sage_fused_kernel,
                               num_layers=num_layers,
                               compute_dtype=compute_dtype)
    call = pl.pallas_call(
        kernel,
        out_shape=jax.ShapeDtypeStruct((N, cpad), jnp.float32),
        grid=(1,),
        in_specs=in_specs,
        out_specs=pl.BlockSpec((N, cpad), lambda i: (0, 0)),
        compiler_params=pltpu.CompilerParams(
            dimension_semantics=("arbitrary",),
            vmem_limit_bytes=32 * 1024 * 1024,
        ),
    )

    @jax.jit
    def forward(x):
        # Only per-call work: pad x to 128 lanes, run the fused kernel, slice.
        x_pad = (jnp.zeros((N, cpad), jnp.float32)
                 .at[:, :cin0].set(x).astype(compute_dtype))
        out = call(adj_bin, inv_deg, x_pad, *weight_args)
        return out[:, :out_channels]

    return forward


# ---------------------------------------------------------------------------
# Parameter init (mirrors SAGE.__init__ shapes)
# ---------------------------------------------------------------------------
def init_sage_params(key, in_channels, hidden_channels, out_channels, num_layers):
    dims = [in_channels] + [hidden_channels] * (num_layers - 1) + [out_channels]
    params = []
    for li in range(num_layers):
        cin, cout = dims[li], dims[li + 1]
        key, k1, k2, k3, k4, k5 = jax.random.split(key, 6)
        scale = 1.0 / jnp.sqrt(jnp.float32(cin))
        layer = {
            "wl": jax.random.normal(k1, (cin, cout), jnp.float32) * scale,
            "wr": jax.random.normal(k2, (cin, cout), jnp.float32) * scale,
            "b":  jax.random.normal(k3, (1, cout), jnp.float32) * 0.01,
        }
        if li < num_layers - 1:  # BatchNorm1d for all but the last conv
            layer["gamma"] = 1.0 + 0.1 * jax.random.normal(k4, (1, cout), jnp.float32)
            layer["beta"] = 0.1 * jax.random.normal(k5, (1, cout), jnp.float32)
            layer["mean"] = 0.05 * jax.random.normal(key, (1, cout), jnp.float32)
            layer["var"] = jnp.ones((1, cout), jnp.float32)
        params.append(layer)
    return params


# ---------------------------------------------------------------------------
# References
# ---------------------------------------------------------------------------
def sage_forward_spec(params, x, adj, eps=1e-5):
    """Pure-JAX f32 reference of the original module (eval mode)."""
    hp = jax.lax.Precision.HIGHEST
    deg = jnp.maximum(adj.sum(axis=1, keepdims=True), 1.0)
    adj_norm = adj / deg
    n = len(params)
    h = x
    for li, p in enumerate(params):
        agg = jnp.dot(adj_norm, h, precision=hp)
        z = (jnp.dot(agg, p["wl"], precision=hp)
             + jnp.dot(h, p["wr"], precision=hp) + p["b"])
        if li < n - 1:
            z = (z - p["mean"]) * jax.lax.rsqrt(p["var"] + eps) * p["gamma"] + p["beta"]
            z = jnp.maximum(z, 0.0)      # dropout: identity at inference
        h = z
    return h


def sage_forward_folded_spec(params, x, adj, eps=1e-5):
    """f32 reference with BN/bias folded into weights (validates fold algebra)."""
    hp = jax.lax.Precision.HIGHEST
    deg = jnp.maximum(adj.sum(axis=1, keepdims=True), 1.0)
    adj_norm = adj / deg
    n = len(params)
    h = x
    for li, p in enumerate(params):
        wl, wr, b = p["wl"], p["wr"], p["b"]
        if li < n - 1:
            s = p["gamma"] * jax.lax.rsqrt(p["var"] + eps)
            wl, wr, b = wl * s, wr * s, (b - p["mean"]) * s + p["beta"]
        agg = jnp.dot(adj_norm, h, precision=hp)
        z = jnp.dot(agg, wl, precision=hp) + jnp.dot(h, wr, precision=hp) + b
        if li < n - 1:
            z = jnp.maximum(z, 0.0)
        h = z
    return h


def sage_forward_matched_ref(params, x, adj, *, eps=1e-5, compute_dtype=jnp.bfloat16):
    """Pure-JAX reference mirroring the kernel's exact mixed-precision arithmetic."""
    N = adj.shape[0]
    cpad = _padded_channels(params)
    cin0 = params[0]["wl"].shape[0]
    out_channels = params[-1]["wl"].shape[1]
    adj_bin = (adj > 0).astype(compute_dtype)
    deg = jnp.maximum(adj.astype(jnp.float32).sum(axis=1, keepdims=True), 1.0)
    inv_deg = (1.0 / deg).astype(jnp.float32)
    folded = fold_bn_stack_pad(params, cpad, compute_dtype, eps)
    x_pad = (jnp.zeros((N, cpad), jnp.float32)
             .at[:, :cin0].set(x).astype(compute_dtype))
    n = len(folded)
    xc, h = x_pad, None
    for li, (w, b) in enumerate(folded):
        agg = jnp.dot(adj_bin, xc, preferred_element_type=jnp.float32)
        agg = (agg * inv_deg).astype(compute_dtype)
        lhs = jnp.concatenate([agg, xc], axis=1)
        h = jnp.dot(lhs, w, preferred_element_type=jnp.float32) + b
        if li < n - 1:
            h = jnp.maximum(h, 0.0)
            xc = h.astype(compute_dtype)
    return h[:, :out_channels]


# ---------------------------------------------------------------------------
if __name__ == "__main__":
    N = 128            # number of nodes
    in_channels = 16
    hidden_channels = 32
    out_channels = 8
    num_layers = 3
    dropout = 0.5      # unused at inference (training=False)

    key = jax.random.PRNGKey(0)
    kx, kadj, kparams = jax.random.split(key, 3)

    # Node features.
    x = jax.random.normal(kx, (N, in_channels), jnp.float32)

    # Random sparse-ish binary adjacency (mean aggregation handled in-kernel).
    adj = (jax.random.uniform(kadj, (N, N)) < 0.1).astype(jnp.float32)

    params = init_sage_params(kparams, in_channels, hidden_channels,
                              out_channels, num_layers)

    # Build the forward closure ONCE (folds BN, stacks/pads/casts weights & adj).
    forward = make_sage_forward(params, adj, compute_dtype=jnp.bfloat16)

    # Run the fused Pallas kernel (bf16 MXU inputs, f32 accumulation/epilogue).
    out = forward(x)
    out = jax.block_until_ready(out)
    assert out.shape == (N, out_channels)
    # Second call exercises the cached per-call path (jit hit, no host prep).
    out2 = jax.block_until_ready(forward(x))
    assert jnp.array_equal(out, out2)

    # 1) Kernel vs a pure-JAX reference with identical mixed-precision rounding.
    ref_matched = sage_forward_matched_ref(params, x, adj,
                                           compute_dtype=jnp.bfloat16)
    assert jnp.allclose(out, ref_matched, atol=2e-2, rtol=2e-2), \
        "Pallas kernel mismatch vs matched-precision reference"

    # 2) BN/bias-folding algebra check in full f32 (no Pallas involved).
    ref_spec = sage_forward_spec(params, x, adj)
    ref_folded = sage_forward_folded_spec(params, x, adj)
    assert jnp.allclose(ref_folded, ref_spec, atol=1e-4, rtol=1e-4), \
        "BN folding mismatch vs original semantics"

    # 3) Kernel vs the full-f32 spec (loose tolerance: bf16 weights/activations).
    assert jnp.allclose(out, ref_spec, atol=1e-1, rtol=1e-1), \
        "Pallas kernel drifted too far from f32 reference"

    print("KERNEL_OK")
</pallas_src>

<mosaic_0001>
module attributes {stable_mosaic.version = 11 : i64} {
  func.func @_sage_fused_kernel(%arg0: i32, %arg1: memref<128x128xbf16, #tpu.memory_space<vmem>>, %arg2: memref<128x1xf32, #tpu.memory_space<vmem>>, %arg3: memref<128x128xbf16, #tpu.memory_space<vmem>>, %arg4: memref<256x128xbf16, #tpu.memory_space<vmem>>, %arg5: memref<1x128xf32, #tpu.memory_space<vmem>>, %arg6: memref<256x128xbf16, #tpu.memory_space<vmem>>, %arg7: memref<1x128xf32, #tpu.memory_space<vmem>>, %arg8: memref<256x128xbf16, #tpu.memory_space<vmem>>, %arg9: memref<1x128xf32, #tpu.memory_space<vmem>>, %arg10: memref<128x128xf32, #tpu.memory_space<vmem>>) attributes {dimension_semantics = [#tpu.dimension_semantics<arbitrary>], iteration_bounds = array<i64: 1>, scalar_prefetch = 0 : i64, scratch_operands = 0 : i64, tpu.core_type = #tpu.core_type<tc>, window_params = [{pipeline_mode = #tpu.pipeline_mode<synchronous>, transform_indices = @transform_0, window_bounds = array<i64: 128, 128>}, {pipeline_mode = #tpu.pipeline_mode<synchronous>, transform_indices = @transform_1, window_bounds = array<i64: 128, 1>}, {pipeline_mode = #tpu.pipeline_mode<synchronous>, transform_indices = @transform_2, window_bounds = array<i64: 128, 128>}, {pipeline_mode = #tpu.pipeline_mode<synchronous>, transform_indices = @transform_3, window_bounds = array<i64: 256, 128>}, {pipeline_mode = #tpu.pipeline_mode<synchronous>, transform_indices = @transform_4, window_bounds = array<i64: 1, 128>}, {pipeline_mode = #tpu.pipeline_mode<synchronous>, transform_indices = @transform_5, window_bounds = array<i64: 256, 128>}, {pipeline_mode = #tpu.pipeline_mode<synchronous>, transform_indices = @transform_6, window_bounds = array<i64: 1, 128>}, {pipeline_mode = #tpu.pipeline_mode<synchronous>, transform_indices = @transform_7, window_bounds = array<i64: 256, 128>}, {pipeline_mode = #tpu.pipeline_mode<synchronous>, transform_indices = @transform_8, window_bounds = array<i64: 1, 128>}, {pipeline_mode = #tpu.pipeline_mode<synchronous>, transform_indices = @transform_9, window_bounds = array<i64: 128, 128>}]} {
    %c0 = arith.constant 0 : index
    %c0_0 = arith.constant 0 : index
    %0 = vector.load %arg1[%c0, %c0_0] : memref<128x128xbf16, #tpu.memory_space<vmem>>, vector<128x128xbf16>
    %c0_1 = arith.constant 0 : index
    %c0_2 = arith.constant 0 : index
    %1 = vector.load %arg2[%c0_1, %c0_2] : memref<128x1xf32, #tpu.memory_space<vmem>>, vector<128x1xf32>
    %c0_3 = arith.constant 0 : index
    %c0_4 = arith.constant 0 : index
    %2 = vector.load %arg3[%c0_3, %c0_4] : memref<128x128xbf16, #tpu.memory_space<vmem>>, vector<128x128xbf16>
    %cst = arith.constant dense<0.000000e+00> : vector<128x128xf32>
    %3 = tpu.matmul %0, %2, %cst {dimension_numbers = #tpu.dot_dimension_numbers<[1], [0], [0], [1], [0, 0, 1, 1], [], []>} : vector<128x128xbf16>, vector<128x128xbf16>, vector<128x128xf32> -> vector<128x128xf32>
    %4 = vector.broadcast %1 : vector<128x1xf32> to vector<128x128xf32>
    %5 = arith.mulf %3, %4 : vector<128x128xf32>
    %6 = arith.truncf %5 : vector<128x128xf32> to vector<128x128xbf16>
    %7 = tpu.concatenate %6, %2 in 1 : vector<128x128xbf16>, vector<128x128xbf16> -> vector<128x256xbf16>
    %c0_5 = arith.constant 0 : index
    %c0_6 = arith.constant 0 : index
    %8 = vector.load %arg4[%c0_5, %c0_6] : memref<256x128xbf16, #tpu.memory_space<vmem>>, vector<256x128xbf16>
    %cst_7 = arith.constant dense<0.000000e+00> : vector<128x128xf32>
    %9 = tpu.matmul %7, %8, %cst_7 {dimension_numbers = #tpu.dot_dimension_numbers<[1], [0], [0], [1], [0, 0, 1, 1], [], []>} : vector<128x256xbf16>, vector<256x128xbf16>, vector<128x128xf32> -> vector<128x128xf32>
    %c0_8 = arith.constant 0 : index
    %c0_9 = arith.constant 0 : index
    %10 = vector.load %arg5[%c0_8, %c0_9] : memref<1x128xf32, #tpu.memory_space<vmem>>, vector<1x128xf32>
    %11 = vector.broadcast %10 : vector<1x128xf32> to vector<128x128xf32>
    %12 = arith.addf %9, %11 : vector<128x128xf32>
    %cst_10 = arith.constant 0.000000e+00 : f32
    %13 = vector.broadcast %cst_10 : f32 to vector<128x128xf32>
    %14 = arith.maximumf %12, %13 : vector<128x128xf32>
    %15 = arith.truncf %14 : vector<128x128xf32> to vector<128x128xbf16>
    %cst_11 = arith.constant dense<0.000000e+00> : vector<128x128xf32>
    %16 = tpu.matmul %0, %15, %cst_11 {dimension_numbers = #tpu.dot_dimension_numbers<[1], [0], [0], [1], [0, 0, 1, 1], [], []>} : vector<128x128xbf16>, vector<128x128xbf16>, vector<128x128xf32> -> vector<128x128xf32>
    %17 = vector.broadcast %1 : vector<128x1xf32> to vector<128x128xf32>
    %18 = arith.mulf %16, %17 : vector<128x128xf32>
    %19 = arith.truncf %18 : vector<128x128xf32> to vector<128x128xbf16>
    %20 = tpu.concatenate %19, %15 in 1 : vector<128x128xbf16>, vector<128x128xbf16> -> vector<128x256xbf16>
    %c0_12 = arith.constant 0 : index
    %c0_13 = arith.constant 0 : index
    %21 = vector.load %arg6[%c0_12, %c0_13] : memref<256x128xbf16, #tpu.memory_space<vmem>>, vector<256x128xbf16>
    %cst_14 = arith.constant dense<0.000000e+00> : vector<128x128xf32>
    %22 = tpu.matmul %20, %21, %cst_14 {dimension_numbers = #tpu.dot_dimension_numbers<[1], [0], [0], [1], [0, 0, 1, 1], [], []>} : vector<128x256xbf16>, vector<256x128xbf16>, vector<128x128xf32> -> vector<128x128xf32>
    %c0_15 = arith.constant 0 : index
    %c0_16 = arith.constant 0 : index
    %23 = vector.load %arg7[%c0_15, %c0_16] : memref<1x128xf32, #tpu.memory_space<vmem>>, vector<1x128xf32>
    %24 = vector.broadcast %23 : vector<1x128xf32> to vector<128x128xf32>
    %25 = arith.addf %22, %24 : vector<128x128xf32>
    %cst_17 = arith.constant 0.000000e+00 : f32
    %26 = vector.broadcast %cst_17 : f32 to vector<128x128xf32>
    %27 = arith.maximumf %25, %26 : vector<128x128xf32>
    %28 = arith.truncf %27 : vector<128x128xf32> to vector<128x128xbf16>
    %cst_18 = arith.constant dense<0.000000e+00> : vector<128x128xf32>
    %29 = tpu.matmul %0, %28, %cst_18 {dimension_numbers = #tpu.dot_dimension_numbers<[1], [0], [0], [1], [0, 0, 1, 1], [], []>} : vector<128x128xbf16>, vector<128x128xbf16>, vector<128x128xf32> -> vector<128x128xf32>
    %30 = vector.broadcast %1 : vector<128x1xf32> to vector<128x128xf32>
    %31 = arith.mulf %29, %30 : vector<128x128xf32>
    %32 = arith.truncf %31 : vector<128x128xf32> to vector<128x128xbf16>
    %33 = tpu.concatenate %32, %28 in 1 : vector<128x128xbf16>, vector<128x128xbf16> -> vector<128x256xbf16>
    %c0_19 = arith.constant 0 : index
    %c0_20 = arith.constant 0 : index
    %34 = vector.load %arg8[%c0_19, %c0_20] : memref<256x128xbf16, #tpu.memory_space<vmem>>, vector<256x128xbf16>
    %cst_21 = arith.constant dense<0.000000e+00> : vector<128x128xf32>
    %35 = tpu.matmul %33, %34, %cst_21 {dimension_numbers = #tpu.dot_dimension_numbers<[1], [0], [0], [1], [0, 0, 1, 1], [], []>} : vector<128x256xbf16>, vector<256x128xbf16>, vector<128x128xf32> -> vector<128x128xf32>
    %c0_22 = arith.constant 0 : index
    %c0_23 = arith.constant 0 : index
    %36 = vector.load %arg9[%c0_22, %c0_23] : memref<1x128xf32, #tpu.memory_space<vmem>>, vector<1x128xf32>
    %37 = vector.broadcast %36 : vector<1x128xf32> to vector<128x128xf32>
    %38 = arith.addf %35, %37 : vector<128x128xf32>
    %c0_24 = arith.constant 0 : index
    %c0_25 = arith.constant 0 : index
    %39 = vector.load %arg10[%c0_24, %c0_25] : memref<128x128xf32, #tpu.memory_space<vmem>>, vector<128x128xf32>
    tpu.vector_store %arg10[%c0_24, %c0_25], %38 {strides = array<i32>} : memref<128x128xf32, #tpu.memory_space<vmem>>, vector<128x128xf32>,
    return
  }
  func.func @transform_0(%arg0: i32) -> (i32, i32) {
    %c0_i32 = arith.constant 0 : i32
    %c0_i32_0 = arith.constant 0 : i32
    %c0_i32_1 = arith.constant 0 : i32
    return %c0_i32, %c0_i32_0 : i32, i32
  }
  func.func @transform_1(%arg0: i32) -> (i32, i32) {
    %c0_i32 = arith.constant 0 : i32
    %c0_i32_0 = arith.constant 0 : i32
    %c0_i32_1 = arith.constant 0 : i32
    return %c0_i32, %c0_i32_0 : i32, i32
  }
  func.func @transform_2(%arg0: i32) -> (i32, i32) {
    %c0_i32 = arith.constant 0 : i32
    %c0_i32_0 = arith.constant 0 : i32
    %c0_i32_1 = arith.constant 0 : i32
    return %c0_i32, %c0_i32_0 : i32, i32
  }
  func.func @transform_3(%arg0: i32) -> (i32, i32) {
    %c0_i32 = arith.constant 0 : i32
    %c0_i32_0 = arith.constant 0 : i32
    %c0_i32_1 = arith.constant 0 : i32
    return %c0_i32, %c0_i32_0 : i32, i32
  }
  func.func @transform_4(%arg0: i32) -> (i32, i32) {
    %c0_i32 = arith.constant 0 : i32
    %c0_i32_0 = arith.constant 0 : i32
    %c0_i32_1 = arith.constant 0 : i32
    return %c0_i32, %c0_i32_0 : i32, i32
  }
  func.func @transform_5(%arg0: i32) -> (i32, i32) {
    %c0_i32 = arith.constant 0 : i32
    %c0_i32_0 = arith.constant 0 : i32
    %c0_i32_1 = arith.constant 0 : i32
    return %c0_i32, %c0_i32_0 : i32, i32
  }
  func.func @transform_6(%arg0: i32) -> (i32, i32) {
    %c0_i32 = arith.constant 0 : i32
    %c0_i32_0 = arith.constant 0 : i32
    %c0_i32_1 = arith.constant 0 : i32
    return %c0_i32, %c0_i32_0 : i32, i32
  }
  func.func @transform_7(%arg0: i32) -> (i32, i32) {
    %c0_i32 = arith.constant 0 : i32
    %c0_i32_0 = arith.constant 0 : i32
    %c0_i32_1 = arith.constant 0 : i32
    return %c0_i32, %c0_i32_0 : i32, i32
  }
  func.func @transform_8(%arg0: i32) -> (i32, i32) {
    %c0_i32 = arith.constant 0 : i32
    %c0_i32_0 = arith.constant 0 : i32
    %c0_i32_1 = arith.constant 0 : i32
    return %c0_i32, %c0_i32_0 : i32, i32
  }
  func.func @transform_9(%arg0: i32) -> (i32, i32) {
    %c0_i32 = arith.constant 0 : i32
    %c0_i32_0 = arith.constant 0 : i32
    %c0_i32_1 = arith.constant 0 : i32
    return %c0_i32, %c0_i32_0 : i32, i32
  }
}

</mosaic_0001>

<llo_original>
// kernel: forward.1
$region0: #{forward.1}
  #allocation0 [shape = 'u32[]', space=smem, size = 0x4, offset = 0x4, fixed_abs, tag = 'smem constant byte address 0x4 - core index']
  #allocation1 [shape = 'u32[144,128]{1,0:T(1,128)}', space=vmem, size = 0x12000, scoped, tag = 'internal scratch']
  %s0 = inlined_call_operand.hbm [shape: bf16[128,128], index: 0, kind: input, shape index: {}]
  %s1 = inlined_call_operand.hbm [shape: f32[128,1], index: 1, kind: input, shape index: {}]
  %s2 = inlined_call_operand.vmem [shape: bf16[128,128], index: 2, kind: input, shape index: {}]
  %s3 = inlined_call_operand.hbm [shape: bf16[256,128], index: 3, kind: input, shape index: {}]
  %s4 = inlined_call_operand.hbm [shape: f32[1,128], index: 4, kind: input, shape index: {}]
  %s5 = inlined_call_operand.vmem [shape: bf16[256,128], index: 5, kind: input, shape index: {}]
  %s6 = inlined_call_operand.hbm [shape: f32[1,128], index: 6, kind: input, shape index: {}]
  %s7 = inlined_call_operand.vmem [shape: bf16[256,128], index: 7, kind: input, shape index: {}]
  %s8 = inlined_call_operand.vmem [shape: f32[1,128], index: 8, kind: input, shape index: {}]
  %s9 = inlined_call_operand.vmem [shape: f32[128,128], index: 9, kind: output, shape index: {}]
  %s10 = sld [smem:[#allocation0]]
  $region66: #{forward.1} parent=0
    _
  %s12 = ssub.s32 1, %s10
  %s13 = scalar_select 0, %s12, %s10
  $region1: #{forward.1} parent=0
    #allocation2 [shape = 'u8[32768]{0}', space=vmem, size = 0x8000, scoped, tag = 'input window, operand 0, single buffered']
    #allocation3 [shape = 's32[1]{0}', space=sflag, size = 0x4, scoped, tag = 'scoped memory for forward.1']
    #allocation4 [shape = 'u8[65536]{0}', space=vmem, size = 0x10000, scoped, tag = 'input window, operand 1, single buffered']
    #allocation5 [shape = 's32[1]{0}', space=sflag, size = 0x4, scoped, tag = 'scoped memory for forward.1']
    #allocation6 [shape = 'u8[65536]{0}', space=vmem, size = 0x10000, scoped, tag = 'input window, operand 3, single buffered']
    #allocation7 [shape = 'u8[512]{0}', space=vmem, size = 0x400, scoped, tag = 'input window, operand 4, single buffered']
    #allocation8 [shape = 's32[1]{0}', space=sflag, size = 0x4, scoped, tag = 'scoped memory for forward.1']
    #allocation9 [shape = 'u8[512]{0}', space=vmem, size = 0x400, scoped, tag = 'input window, operand 6, single buffered']
    %14 = vsyncpa [#allocation3], 0
    %15 = vsyncpa [#allocation5], 0
    %16 = vsyncpa [#allocation8], 0
    // Predicated region
    $region2: #{forward.1} parent=1 // pred_check
      _
    $region3: #{forward.1} parent=1 // pred_check_branch
      %18 = sbr.rel (0) target = $region5
    $region4: #{forward.1} parent=1 // pred_region
      %s20 = ssub.s32 1024, 1024
      %21 = vsyncadd [#allocation3], %s20
      %s22 = sshll.u32 [#allocation2], 4
      %s23 = int_to_ptr.vmem [resolvable:$true] %s22
      %28 = dma.hbm_to_vmem [thread:$0]  %s0, 1024, %s23, [#allocation3], 64, 64, 4
    $region5: #{forward.1} parent=1 // pred_fallthru
      _
    // Predicated region
    $region6: #{forward.1} parent=1 // pred_check
      _
    $region7: #{forward.1} parent=1 // pred_check_branch
      %30 = sbr.rel (0) target = $region9
    $region8: #{forward.1} parent=1 // pred_region
      %s32 = ssub.s32 2048, 2048
      %33 = vsyncadd [#allocation5], %s32
      %s34 = sshll.u32 [#allocation4], 4
      %s35 = int_to_ptr.vmem [resolvable:$true] %s34
      %40 = dma.hbm_to_vmem [thread:$0]  %s1, 2048, %s35, [#allocation5], 128, 128, 8
    $region9: #{forward.1} parent=1 // pred_fallthru
      _
    // Predicated region
    $region10: #{forward.1} parent=1 // pred_check
      _
    $region11: #{forward.1} parent=1 // pred_check_branch
      %42 = sbr.rel (0) target = $region13
    $region12: #{forward.1} parent=1 // pred_region
      _
    $region13: #{forward.1} parent=1 // pred_fallthru
      _
    // Predicated region
    $region14: #{forward.1} parent=1 // pred_check
      _
    $region15: #{forward.1} parent=1 // pred_check_branch
      %44 = sbr.rel (0) target = $region17
    $region16: #{forward.1} parent=1 // pred_region
      %s46 = ssub.s32 2048, 2048
      %47 = vsyncadd [#allocation5], %s46
      %s48 = sshll.u32 [#allocation6], 4
      %s49 = int_to_ptr.vmem [resolvable:$true] %s48
      %54 = dma.hbm_to_vmem [thread:$0]  %s3, 2048, %s49, [#allocation5], 64, 64, 4
    $region17: #{forward.1} parent=1 // pred_fallthru
      _
    // Predicated region
    $region18: #{forward.1} parent=1 // pred_check
      _
    $region19: #{forward.1} parent=1 // pred_check_branch
      %56 = sbr.rel (0) target = $region21
    $region20: #{forward.1} parent=1 // pred_region
      %s58 = ssub.s32 16, 16
      %59 = vsyncadd [#allocation8], %s58
      %s61 = sshll.u32 [#allocation7], 4
      %s62 = int_to_ptr.vmem [resolvable:$true] %s61
      %64 = dma.hbm_to_vmem [thread:$0]  %s4, 16, %s62, [#allocation8]
    $region21: #{forward.1} parent=1 // pred_fallthru
      _
    // Predicated region
    $region22: #{forward.1} parent=1 // pred_check
      _
    $region23: #{forward.1} parent=1 // pred_check_branch
      %66 = sbr.rel (0) target = $region25
    $region24: #{forward.1} parent=1 // pred_region
      _
    $region25: #{forward.1} parent=1 // pred_fallthru
      _
    // Predicated region
    $region26: #{forward.1} parent=1 // pred_check
      _
    $region27: #{forward.1} parent=1 // pred_check_branch
      %68 = sbr.rel (0) target = $region29
    $region28: #{forward.1} parent=1 // pred_region
      %s70 = ssub.s32 16, 16
      %71 = vsyncadd [#allocation8], %s70
      %s73 = sshll.u32 [#allocation9], 4
      %s74 = int_to_ptr.vmem [resolvable:$true] %s73
      %76 = dma.hbm_to_vmem [thread:$0]  %s6, 16, %s74, [#allocation8]
    $region29: #{forward.1} parent=1 // pred_fallthru
      _
    // Predicated region
    $region30: #{forward.1} parent=1 // pred_check
      _
    $region31: #{forward.1} parent=1 // pred_check_branch
      %78 = sbr.rel (0) target = $region33
    $region32: #{forward.1} parent=1 // pred_region
      _
    $region33: #{forward.1} parent=1 // pred_fallthru
      _
    // Predicated region
    $region34: #{forward.1} parent=1 // pred_check
      _
    $region35: #{forward.1} parent=1 // pred_check_branch
      %80 = sbr.rel (0) target = $region37
    $region36: #{forward.1} parent=1 // pred_region
      _
    $region37: #{forward.1} parent=1 // pred_fallthru
      _
    // Predicated region
    $region38: #{forward.1} parent=1 // pred_check
      _
    $region39: #{forward.1} parent=1 // pred_check_branch
      %82 = sbr.rel (0) target = $region41
    $region40: #{forward.1} parent=1 // pred_region
      %83 = dma.done [#allocation3], 1024
    $region41: #{forward.1} parent=1 // pred_fallthru
      _
    // Predicated region
    $region42: #{forward.1} parent=1 // pred_check
      _
    $region43: #{forward.1} parent=1 // pred_check_branch
      %85 = sbr.rel (0) target = $region45
    $region44: #{forward.1} parent=1 // pred_region
      %86 = dma.done [#allocation5], 2048
    $region45: #{forward.1} parent=1 // pred_fallthru
      _
    // Predicated region
    $region46: #{forward.1} parent=1 // pred_check
      _
    $region47: #{forward.1} parent=1 // pred_check_branch
      %88 = sbr.rel (0) target = $region49
    $region48: #{forward.1} parent=1 // pred_region
      %89 = dma.done [#allocation5], 2048
    $region49: #{forward.1} parent=1 // pred_fallthru
      _
    // Predicated region
    $region50: #{forward.1} parent=1 // pred_check
      _
    $region51: #{forward.1} parent=1 // pred_check_branch
      %91 = sbr.rel (0) target = $region53
    $region52: #{forward.1} parent=1 // pred_region
      %92 = dma.done [#allocation8], 16
    $region53: #{forward.1} parent=1 // pred_fallthru
      _
    // Predicated region
    $region54: #{forward.1} parent=1 // pred_check
      _
    $region55: #{forward.1} parent=1 // pred_check_branch
      %94 = sbr.rel (0) target = $region57
    $region56: #{forward.1} parent=1 // pred_region
      %95 = dma.done [#allocation8], 16
    $region57: #{forward.1} parent=1 // pred_fallthru
      _
    %v97 = vld [vmem:[#allocation2] sm:$0xf]
    %v98 = vld [vmem:[#allocation2 + $0x4] sm:$0xf]
    %v99 = vld [vmem:[#allocation2 + $0x8] sm:$0xf]
    %v100 = vld [vmem:[#allocation2 + $0xc] sm:$0xf]
    %v101 = vld [vmem:[#allocation2 + $0x10] sm:$0xf]
    %v102 = vld [vmem:[#allocation2 + $0x14] sm:$0xf]
    %v103 = vld [vmem:[#allocation2 + $0x18] sm:$0xf]
    %v104 = vld [vmem:[#allocation2 + $0x1c] sm:$0xf]
    %v105 = vld [vmem:[#allocation2 + $0x20] sm:$0xf]
    %v106 = vld [vmem:[#allocation2 + $0x24] sm:$0xf]
    %v107 = vld [vmem:[#allocation2 + $0x28] sm:$0xf]
    %v108 = vld [vmem:[#allocation2 + $0x2c] sm:$0xf]
    %v109 = vld [vmem:[#allocation2 + $0x30] sm:$0xf]
    %v110 = vld [vmem:[#allocation2 + $0x34] sm:$0xf]
    %v111 = vld [vmem:[#allocation2 + $0x38] sm:$0xf]
    %v112 = vld [vmem:[#allocation2 + $0x3c] sm:$0xf]
    %v113 = vld [vmem:[#allocation4] sm:$0xff]
    %v114 = vld [vmem:[#allocation4 + $0x8] sm:$0xff]
    %v115 = vld [vmem:[#allocation4 + $0x10] sm:$0xff]
    %v116 = vld [vmem:[#allocation4 + $0x18] sm:$0xff]
    %v117 = vld [vmem:[#allocation4 + $0x20] sm:$0xff]
    %v118 = vld [vmem:[#allocation4 + $0x28] sm:$0xff]
    %v119 = vld [vmem:[#allocation4 + $0x30] sm:$0xff]
    %v120 = vld [vmem:[#allocation4 + $0x38] sm:$0xff]
    %v121 = vld [vmem:[#allocation4 + $0x40] sm:$0xff]
    %v122 = vld [vmem:[#allocation4 + $0x48] sm:$0xff]
    %v123 = vld [vmem:[#allocation4 + $0x50] sm:$0xff]
    %v124 = vld [vmem:[#allocation4 + $0x58] sm:$0xff]
    %v125 = vld [vmem:[#allocation4 + $0x60] sm:$0xff]
    %v126 = vld [vmem:[#allocation4 + $0x68] sm:$0xff]
    %v127 = vld [vmem:[#allocation4 + $0x70] sm:$0xff]
    %v128 = vld [vmem:[#allocation4 + $0x78] sm:$0xff]
    %v129 = vld [vmem:[%s2] sm:$0xf]
    %v130 = vld [vmem:[%s2 + $0x4] sm:$0xf]
    %v131 = vld [vmem:[%s2 + $0x8] sm:$0xf]
    %v132 = vld [vmem:[%s2 + $0xc] sm:$0xf]
    %v133 = vld [vmem:[%s2 + $0x10] sm:$0xf]
    %v134 = vld [vmem:[%s2 + $0x14] sm:$0xf]
    %v135 = vld [vmem:[%s2 + $0x18] sm:$0xf]
    %v136 = vld [vmem:[%s2 + $0x1c] sm:$0xf]
    %v137 = vld [vmem:[%s2 + $0x20] sm:$0xf]
    %v138 = vld [vmem:[%s2 + $0x24] sm:$0xf]
    %v139 = vld [vmem:[%s2 + $0x28] sm:$0xf]
    %v140 = vld [vmem:[%s2 + $0x2c] sm:$0xf]
    %v141 = vld [vmem:[%s2 + $0x30] sm:$0xf]
    %v142 = vld [vmem:[%s2 + $0x34] sm:$0xf]
    %v143 = vld [vmem:[%s2 + $0x38] sm:$0xf]
    %v144 = vld [vmem:[%s2 + $0x3c] sm:$0xf]
    %v161 = vunpack.c.l.b16 %v97
    %v162 = vunpack.c.l.b16 %v98
    %v163 = vunpack.c.l.b16 %v99
    %v164 = vunpack.c.l.b16 %v100
    %v165 = vunpack.c.l.b16 %v101
    %v166 = vunpack.c.l.b16 %v102
    %v167 = vunpack.c.l.b16 %v103
    %v168 = vunpack.c.l.b16 %v104
    %v169 = vunpack.c.l.b16 %v105
    %v170 = vunpack.c.l.b16 %v106
    %v171 = vunpack.c.l.b16 %v107
    %v172 = vunpack.c.l.b16 %v108
    %v173 = vunpack.c.l.b16 %v109
    %v174 = vunpack.c.l.b16 %v110
    %v175 = vunpack.c.l.b16 %v111
    %v176 = vunpack.c.l.b16 %v112
    %v177 = vpack.c.b16 %v162, %v161
    %v178 = vpack.c.b16 %v164, %v163
    %v179 = vpack.c.b16 %v166, %v165
    %v180 = vpack.c.b16 %v168, %v167
    %v181 = vpack.c.b16 %v170, %v169
    %v182 = vpack.c.b16 %v172, %v171
    %v183 = vpack.c.b16 %v174, %v173
    %v184 = vpack.c.b16 %v176, %v175
    %v209 = vunpack.c.l.b16 %v129
    %v210 = vunpack.c.l.b16 %v130
    %v211 = vunpack.c.l.b16 %v131
    %v212 = vunpack.c.l.b16 %v132
    %v213 = vunpack.c.l.b16 %v133
    %v214 = vunpack.c.l.b16 %v134
    %v215 = vunpack.c.l.b16 %v135
    %v216 = vunpack.c.l.b16 %v136
    %v217 = vunpack.c.l.b16 %v137
    %v218 = vunpack.c.l.b16 %v138
    %v219 = vunpack.c.l.b16 %v139
    %v220 = vunpack.c.l.b16 %v140
    %v221 = vunpack.c.l.b16 %v141
    %v222 = vunpack.c.l.b16 %v142
    %v223 = vunpack.c.l.b16 %v143
    %v224 = vunpack.c.l.b16 %v144
    %v225 = vpack.c.b16 %v210, %v209
    %v226 = vpack.c.b16 %v212, %v211
    %v227 = vpack.c.b16 %v214, %v213
    %v228 = vpack.c.b16 %v216, %v215
    %v229 = vpack.c.b16 %v218, %v217
    %v230 = vpack.c.b16 %v220, %v219
    %v231 = vpack.c.b16 %v222, %v221
    %v232 = vpack.c.b16 %v224, %v223
    %241 = vmatprep.subr.bf16.mxu0 0
    %242 = vmatpush1.bf16.msra.mxu0 %v225
    %243 = vmatprep.subr.bf16.mxu0 0
    %244 = vmatpush1.bf16.msra.mxu0 %v226
    %245 = vmatprep.subr.bf16.mxu0 0
    %246 = vmatpush1.bf16.msra.mxu0 %v227
    %247 = vmatprep.subr.bf16.mxu0 0
    %248 = vmatpush1.bf16.msra.mxu0 %v228
    %249 = vmatprep.subr.bf16.mxu0 0
    %250 = vmatpush1.bf16.msra.mxu0 %v229
    %251 = vmatprep.subr.bf16.mxu0 0
    %252 = vmatpush1.bf16.msra.mxu0 %v230
    %253 = vmatprep.subr.bf16.mxu0 0
    %254 = vmatpush1.bf16.msra.mxu0 %v231
    %255 = vmatprep.subr.bf16.mxu0 0
    %256 = vmatpush1.bf16.msra.mxu0 %v232
    %257 = vmatprep.subr.bf16.mxu0 0
    %258 = vmatpush1.bf16.msra.mxu0 0
    %259 = vmatprep.subr.bf16.mxu0 0
    %260 = vmatpush1.bf16.msra.mxu0 0
    %261 = vmatprep.subr.bf16.mxu0 0
    %262 = vmatpush1.bf16.msra.mxu0 0
    %263 = vmatprep.subr.bf16.mxu0 0
    %264 = vmatpush1.bf16.msra.mxu0 0
    %265 = vmatprep.subr.bf16.mxu0 0
    %266 = vmatpush1.bf16.msra.mxu0 0
    %267 = vmatprep.subr.bf16.mxu0 0
    %268 = vmatpush1.bf16.msra.mxu0 0
    %269 = vmatprep.subr.bf16.mxu0 0
    %270 = vmatpush1.bf16.msra.mxu0 0
    %271 = vmatprep.subr.bf16.mxu0 0
    %272 = vmatpush1.bf16.msra.mxu0 0
    %273 = vmatprep.mubr.bf16.mxu0 0
    %274 = vmatmul.mubr.bf16.gmra.mrb[0].mxu0 %v177
    %v275 = vpop.f32.mrb[0].mxu0
    %v276 = vadd.f32 0.0, %v275
    %v277 = vpop.f32.mrb[0].mxu0
    %v278 = vpop.f32.mrb[0].mxu0
    %v279 = vadd.f32 0.0, %v278
    %v280 = vpop.f32.mrb[0].mxu0
    %281 = vmatprep.mubr.bf16.mxu0 0
    %282 = vmatmul.mubr.bf16.gmra.mrb[0].mxu0 %v178
    %v283 = vpop.f32.mrb[0].mxu0
    %v284 = vadd.f32 0.0, %v283
    %v285 = vpop.f32.mrb[0].mxu0
    %v286 = vpop.f32.mrb[0].mxu0
    %v287 = vadd.f32 0.0, %v286
    %v288 = vpop.f32.mrb[0].mxu0
    %289 = vmatprep.mubr.bf16.mxu0 0
    %290 = vmatmul.mubr.bf16.gmra.mrb[0].mxu0 %v179
    %v291 = vpop.f32.mrb[0].mxu0
    %v292 = vadd.f32 0.0, %v291
    %v293 = vpop.f32.mrb[0].mxu0
    %v294 = vpop.f32.mrb[0].mxu0
    %v295 = vadd.f32 0.0, %v294
    %v296 = vpop.f32.mrb[0].mxu0
    %297 = vmatprep.mubr.bf16.mxu0 0
    %298 = vmatmul.mubr.bf16.gmra.mrb[0].mxu0 %v180
    %v299 = vpop.f32.mrb[0].mxu0
    %v300 = vadd.f32 0.0, %v299
    %v301 = vpop.f32.mrb[0].mxu0
    %v302 = vpop.f32.mrb[0].mxu0
    %v303 = vadd.f32 0.0, %v302
    %v304 = vpop.f32.mrb[0].mxu0
    %305 = vmatprep.mubr.bf16.mxu0 0
    %306 = vmatmul.mubr.bf16.gmra.mrb[0].mxu0 %v181
    %v307 = vpop.f32.mrb[0].mxu0
    %v308 = vadd.f32 0.0, %v307
    %v309 = vpop.f32.mrb[0].mxu0
    %v310 = vpop.f32.mrb[0].mxu0
    %v311 = vadd.f32 0.0, %v310
    %v312 = vpop.f32.mrb[0].mxu0
    %313 = vmatprep.mubr.bf16.mxu0 0
    %314 = vmatmul.mubr.bf16.gmra.mrb[0].mxu0 %v182
    %v315 = vpop.f32.mrb[0].mxu0
    %v316 = vadd.f32 0.0, %v315
    %v317 = vpop.f32.mrb[0].mxu0
    %v318 = vpop.f32.mrb[0].mxu0
    %v319 = vadd.f32 0.0, %v318
    %v320 = vpop.f32.mrb[0].mxu0
    %321 = vmatprep.mubr.bf16.mxu0 0
    %322 = vmatmul.mubr.bf16.gmra.mrb[0].mxu0 %v183
    %v323 = vpop.f32.mrb[0].mxu0
    %v324 = vadd.f32 0.0, %v323
    %v325 = vpop.f32.mrb[0].mxu0
    %v326 = vpop.f32.mrb[0].mxu0
    %v327 = vadd.f32 0.0, %v326
    %v328 = vpop.f32.mrb[0].mxu0
    %329 = vmatprep.mubr.bf16.mxu0 0
    %330 = vmatmul.mubr.bf16.gmra.mrb[0].mxu0 %v184
    %v331 = vpop.f32.mrb[0].mxu0
    %v332 = vadd.f32 0.0, %v331
    %v333 = vpop.f32.mrb[0].mxu0
    %v334 = vpop.f32.mrb[0].mxu0
    %v335 = vadd.f32 0.0, %v334
    %v336 = vpop.f32.mrb[0].mxu0
    %337 = vdwg.mxu0
    %339 = vset.pattern.permute.xlu0 0
    %340 = vperm.xlu0 %339, %v113
    %v341 = vpop.permute.xlu0 %340
    %344 = vset.pattern.permute.xlu0 0
    %345 = vperm.xlu0 %344, %v114
    %v346 = vpop.permute.xlu0 %345
    %349 = vset.pattern.permute.xlu0 0
    %350 = vperm.xlu0 %349, %v115
    %v351 = vpop.permute.xlu0 %350
    %354 = vset.pattern.permute.xlu0 0
    %355 = vperm.xlu0 %354, %v116
    %v356 = vpop.permute.xlu0 %355
    %359 = vset.pattern.permute.xlu0 0
    %360 = vperm.xlu0 %359, %v117
    %v361 = vpop.permute.xlu0 %360
    %364 = vset.pattern.permute.xlu0 0
    %365 = vperm.xlu0 %364, %v118
    %v366 = vpop.permute.xlu0 %365
    %369 = vset.pattern.permute.xlu0 0
    %370 = vperm.xlu0 %369, %v119
    %v371 = vpop.permute.xlu0 %370
    %374 = vset.pattern.permute.xlu0 0
    %375 = vperm.xlu0 %374, %v120
    %v376 = vpop.permute.xlu0 %375
    %379 = vset.pattern.permute.xlu0 0
    %380 = vperm.xlu0 %379, %v121
    %v381 = vpop.permute.xlu0 %380
    %384 = vset.pattern.permute.xlu0 0
    %385 = vperm.xlu0 %384, %v122
    %v386 = vpop.permute.xlu0 %385
    %389 = vset.pattern.permute.xlu0 0
    %390 = vperm.xlu0 %389, %v123
    %v391 = vpop.permute.xlu0 %390
    %394 = vset.pattern.permute.xlu0 0
    %395 = vperm.xlu0 %394, %v124
    %v396 = vpop.permute.xlu0 %395
    %399 = vset.pattern.permute.xlu0 0
    %400 = vperm.xlu0 %399, %v125
    %v401 = vpop.permute.xlu0 %400
    %404 = vset.pattern.permute.xlu0 0
    %405 = vperm.xlu0 %404, %v126
    %v406 = vpop.permute.xlu0 %405
    %409 = vset.pattern.permute.xlu0 0
    %410 = vperm.xlu0 %409, %v127
    %v411 = vpop.permute.xlu0 %410
    %414 = vset.pattern.permute.xlu0 0
    %415 = vperm.xlu0 %414, %v128
    %v416 = vpop.permute.xlu0 %415
    %v418 = vmul.f32 %v276, %v341
    %v419 = vmul.f32 %v279, %v346
    %v420 = vmul.f32 %v284, %v351
    %v421 = vmul.f32 %v287, %v356
    %v422 = vmul.f32 %v292, %v361
    %v423 = vmul.f32 %v295, %v366
    %v424 = vmul.f32 %v300, %v371
    %v425 = vmul.f32 %v303, %v376
    %v426 = vmul.f32 %v308, %v381
    %v427 = vmul.f32 %v311, %v386
    %v428 = vmul.f32 %v316, %v391
    %v429 = vmul.f32 %v319, %v396
    %v430 = vmul.f32 %v324, %v401
    %v431 = vmul.f32 %v327, %v406
    %v432 = vmul.f32 %v332, %v411
    %v433 = vmul.f32 %v335, %v416
    %v434 = vpack.c.bf16 %v419, %v418
    %v435 = vpack.c.bf16 %v421, %v420
    %v436 = vpack.c.bf16 %v423, %v422
    %v437 = vpack.c.bf16 %v425, %v424
    %v438 = vpack.c.bf16 %v427, %v426
    %v439 = vpack.c.bf16 %v429, %v428
    %v440 = vpack.c.bf16 %v431, %v430
    %v441 = vpack.c.bf16 %v433, %v432
    %v442 = vld [vmem:[#allocation6] sm:$0xf]
    %v443 = vld [vmem:[#allocation6 + $0x4] sm:$0xf]
    %v444 = vld [vmem:[#allocation6 + $0x8] sm:$0xf]
    %v445 = vld [vmem:[#allocation6 + $0xc] sm:$0xf]
    %v446 = vld [vmem:[#allocation6 + $0x10] sm:$0xf]
    %v447 = vld [vmem:[#allocation6 + $0x14] sm:$0xf]
    %v448 = vld [vmem:[#allocation6 + $0x18] sm:$0xf]
    %v449 = vld [vmem:[#allocation6 + $0x1c] sm:$0xf]
    %v450 = vld [vmem:[#allocation6 + $0x20] sm:$0xf]
    %v451 = vld [vmem:[#allocation6 + $0x24] sm:$0xf]
    %v452 = vld [vmem:[#allocation6 + $0x28] sm:$0xf]
    %v453 = vld [vmem:[#allocation6 + $0x2c] sm:$0xf]
    %v454 = vld [vmem:[#allocation6 + $0x30] sm:$0xf]
    %v455 = vld [vmem:[#allocation6 + $0x34] sm:$0xf]
    %v456 = vld [vmem:[#allocation6 + $0x38] sm:$0xf]
    %v457 = vld [vmem:[#allocation6 + $0x3c] sm:$0xf]
    %v458 = vld [vmem:[#allocation6 + $0x40] sm:$0xf]
    %v459 = vld [vmem:[#allocation6 + $0x44] sm:$0xf]
    %v460 = vld [vmem:[#allocation6 + $0x48] sm:$0xf]
    %v461 = vld [vmem:[#allocation6 + $0x4c] sm:$0xf]
    %v462 = vld [vmem:[#allocation6 + $0x50] sm:$0xf]
    %v463 = vld [vmem:[#allocation6 + $0x54] sm:$0xf]
    %v464 = vld [vmem:[#allocation6 + $0x58] sm:$0xf]
    %v465 = vld [vmem:[#allocation6 + $0x5c] sm:$0xf]
    %v466 = vld [vmem:[#allocation6 + $0x60] sm:$0xf]
    %v467 = vld [vmem:[#allocation6 + $0x64] sm:$0xf]
    %v468 = vld [vmem:[#allocation6 + $0x68] sm:$0xf]
    %v469 = vld [vmem:[#allocation6 + $0x6c] sm:$0xf]
    %v470 = vld [vmem:[#allocation6 + $0x70] sm:$0xf]
    %v471 = vld [vmem:[#allocation6 + $0x74] sm:$0xf]
    %v472 = vld [vmem:[#allocation6 + $0x78] sm:$0xf]
    %v473 = vld [vmem:[#allocation6 + $0x7c] sm:$0xf]
    %v474 = vld [vmem:[#allocation7] sm:$0x1]
    %v476 = vlaneseq
    %v477 = vshrl.u32 %v476, 7
    %v478 = vsub.s32 0, %v477
    %v479 = vrot.slane %v474, %v478
    %v513 = vunpack.c.l.b16 %v442
    %v514 = vunpack.c.l.b16 %v443
    %v515 = vunpack.c.l.b16 %v444
    %v516 = vunpack.c.l.b16 %v445
    %v517 = vunpack.c.l.b16 %v446
    %v518 = vunpack.c.l.b16 %v447
    %v519 = vunpack.c.l.b16 %v448
    %v520 = vunpack.c.l.b16 %v449
    %v521 = vunpack.c.l.b16 %v450
    %v522 = vunpack.c.l.b16 %v451
    %v523 = vunpack.c.l.b16 %v452
    %v524 = vunpack.c.l.b16 %v453
    %v525 = vunpack.c.l.b16 %v454
    %v526 = vunpack.c.l.b16 %v455
    %v527 = vunpack.c.l.b16 %v456
    %v528 = vunpack.c.l.b16 %v457
    %v529 = vunpack.c.l.b16 %v458
    %v530 = vunpack.c.l.b16 %v459
    %v531 = vunpack.c.l.b16 %v460
    %v532 = vunpack.c.l.b16 %v461
    %v533 = vunpack.c.l.b16 %v462
    %v534 = vunpack.c.l.b16 %v463
    %v535 = vunpack.c.l.b16 %v464
    %v536 = vunpack.c.l.b16 %v465
    %v537 = vunpack.c.l.b16 %v466
    %v538 = vunpack.c.l.b16 %v467
    %v539 = vunpack.c.l.b16 %v468
    %v540 = vunpack.c.l.b16 %v469
    %v541 = vunpack.c.l.b16 %v470
    %v542 = vunpack.c.l.b16 %v471
    %v543 = vunpack.c.l.b16 %v472
    %v544 = vunpack.c.l.b16 %v473
    %v545 = vpack.c.b16 %v514, %v513
    %v546 = vpack.c.b16 %v516, %v515
    %v547 = vpack.c.b16 %v518, %v517
    %v548 = vpack.c.b16 %v520, %v519
    %v549 = vpack.c.b16 %v522, %v521
    %v550 = vpack.c.b16 %v524, %v523
    %v551 = vpack.c.b16 %v526, %v525
    %v552 = vpack.c.b16 %v528, %v527
    %v553 = vpack.c.b16 %v530, %v529
    %v554 = vpack.c.b16 %v532, %v531
    %v555 = vpack.c.b16 %v534, %v533
    %v556 = vpack.c.b16 %v536, %v535
    %v557 = vpack.c.b16 %v538, %v537
    %v558 = vpack.c.b16 %v540, %v539
    %v559 = vpack.c.b16 %v542, %v541
    %v560 = vpack.c.b16 %v544, %v543
    %577 = vmatprep.subr.bf16.mxu0 0
    %578 = vmatpush1.bf16.msra.mxu0 %v545
    %579 = vmatprep.subr.bf16.mxu0 0
    %580 = vmatpush1.bf16.msra.mxu0 %v546
    %581 = vmatprep.subr.bf16.mxu0 0
    %582 = vmatpush1.bf16.msra.mxu0 %v547
    %583 = vmatprep.subr.bf16.mxu0 0
    %584 = vmatpush1.bf16.msra.mxu0 %v548
    %585 = vmatprep.subr.bf16.mxu0 0
    %586 = vmatpush1.bf16.msra.mxu0 %v549
    %587 = vmatprep.subr.bf16.mxu0 0
    %588 = vmatpush1.bf16.msra.mxu0 %v550
    %589 = vmatprep.subr.bf16.mxu0 0
    %590 = vmatpush1.bf16.msra.mxu0 %v551
    %591 = vmatprep.subr.bf16.mxu0 0
    %592 = vmatpush1.bf16.msra.mxu0 %v552
    %593 = vmatprep.subr.bf16.mxu0 0
    %594 = vmatpush1.bf16.msra.mxu0 %v553
    %595 = vmatprep.subr.bf16.mxu0 0
    %596 = vmatpush1.bf16.msra.mxu0 %v554
    %597 = vmatprep.subr.bf16.mxu0 0
    %598 = vmatpush1.bf16.msra.mxu0 %v555
    %599 = vmatprep.subr.bf16.mxu0 0
    %600 = vmatpush1.bf16.msra.mxu0 %v556
    %601 = vmatprep.subr.bf16.mxu0 0
    %602 = vmatpush1.bf16.msra.mxu0 %v557
    %603 = vmatprep.subr.bf16.mxu0 0
    %604 = vmatpush1.bf16.msra.mxu0 %v558
    %605 = vmatprep.subr.bf16.mxu0 0
    %606 = vmatpush1.bf16.msra.mxu0 %v559
    %607 = vmatprep.subr.bf16.mxu0 0
    %608 = vmatpush1.bf16.msra.mxu0 %v560
    %609 = vmatprep.mubr.bf16.mxu0 %v225
    %610 = vmatmul.mubr.bf16.gmra.mrb[0].mxu0 %v434
    %v611 = vpop.f32.mrb[0].mxu0
    %v612 = vadd.f32 %v479, %v611
    %v613 = vpop.f32.mrb[0].mxu0
    %v614 = vpop.f32.mrb[0].mxu0
    %v615 = vadd.f32 %v479, %v614
    %v616 = vpop.f32.mrb[0].mxu0
    %617 = vmatprep.mubr.bf16.mxu0 %v226
    %618 = vmatmul.mubr.bf16.gmra.mrb[0].mxu0 %v435
    %v619 = vpop.f32.mrb[0].mxu0
    %v620 = vadd.f32 %v479, %v619
    %v621 = vpop.f32.mrb[0].mxu0
    %v622 = vpop.f32.mrb[0].mxu0
    %v623 = vadd.f32 %v479, %v622
    %v624 = vpop.f32.mrb[0].mxu0
    %625 = vmatprep.mubr.bf16.mxu0 %v227
    %626 = vmatmul.mubr.bf16.gmra.mrb[0].mxu0 %v436
    %v627 = vpop.f32.mrb[0].mxu0
    %v628 = vadd.f32 %v479, %v627
    %v629 = vpop.f32.mrb[0].mxu0
    %v630 = vpop.f32.mrb[0].mxu0
    %v631 = vadd.f32 %v479, %v630
    %v632 = vpop.f32.mrb[0].mxu0
    %633 = vmatprep.mubr.bf16.mxu0 %v228
    %634 = vmatmul.mubr.bf16.gmra.mrb[0].mxu0 %v437
    %v635 = vpop.f32.mrb[0].mxu0
    %v636 = vadd.f32 %v479, %v635
    %v637 = vpop.f32.mrb[0].mxu0
    %v638 = vpop.f32.mrb[0].mxu0
    %v639 = vadd.f32 %v479, %v638
    %v640 = vpop.f32.mrb[0].mxu0
    %641 = vmatprep.mubr.bf16.mxu0 %v229
    %642 = vmatmul.mubr.bf16.gmra.mrb[0].mxu0 %v438
    %v643 = vpop.f32.mrb[0].mxu0
    %v644 = vadd.f32 %v479, %v643
    %v645 = vpop.f32.mrb[0].mxu0
    %v646 = vpop.f32.mrb[0].mxu0
    %v647 = vadd.f32 %v479, %v646
    %v648 = vpop.f32.mrb[0].mxu0
    %649 = vmatprep.mubr.bf16.mxu0 %v230
    %650 = vmatmul.mubr.bf16.gmra.mrb[0].mxu0 %v439
    %v651 = vpop.f32.mrb[0].mxu0
    %v652 = vadd.f32 %v479, %v651
    %v653 = vpop.f32.mrb[0].mxu0
    %v654 = vpop.f32.mrb[0].mxu0
    %v655 = vadd.f32 %v479, %v654
    %v656 = vpop.f32.mrb[0].mxu0
    %657 = vmatprep.mubr.bf16.mxu0 %v231
    %658 = vmatmul.mubr.bf16.gmra.mrb[0].mxu0 %v440
    %v659 = vpop.f32.mrb[0].mxu0
    %v660 = vadd.f32 %v479, %v659
    %v661 = vpop.f32.mrb[0].mxu0
    %v662 = vpop.f32.mrb[0].mxu0
    %v663 = vadd.f32 %v479, %v662
    %v664 = vpop.f32.mrb[0].mxu0
    %665 = vmatprep.mubr.bf16.mxu0 %v232
    %666 = vmatmul.mubr.bf16.gmra.mrb[0].mxu0 %v441
    %v667 = vpop.f32.mrb[0].mxu0
    %v668 = vadd.f32 %v479, %v667
    %v669 = vpop.f32.mrb[0].mxu0
    %v670 = vpop.f32.mrb[0].mxu0
    %v671 = vadd.f32 %v479, %v670
    %v672 = vpop.f32.mrb[0].mxu0
    %673 = vdwg.mxu0
    %v674 = vmax.f32 %v612, 0.0
    %v675 = vmax.f32 %v615, 0.0
    %v676 = vmax.f32 %v620, 0.0
    %v677 = vmax.f32 %v623, 0.0
    %v678 = vmax.f32 %v628, 0.0
    %v679 = vmax.f32 %v631, 0.0
    %v680 = vmax.f32 %v636, 0.0
    %v681 = vmax.f32 %v639, 0.0
    %v682 = vmax.f32 %v644, 0.0
    %v683 = vmax.f32 %v647, 0.0
    %v684 = vmax.f32 %v652, 0.0
    %v685 = vmax.f32 %v655, 0.0
    %v686 = vmax.f32 %v660, 0.0
    %v687 = vmax.f32 %v663, 0.0
    %v688 = vmax.f32 %v668, 0.0
    %v689 = vmax.f32 %v671, 0.0
    %v690 = vpack.c.bf16 %v675, %v674
    %v691 = vpack.c.bf16 %v677, %v676
    %v692 = vpack.c.bf16 %v679, %v678
    %v693 = vpack.c.bf16 %v681, %v680
    %v694 = vpack.c.bf16 %v683, %v682
    %v695 = vpack.c.bf16 %v685, %v684
    %v696 = vpack.c.bf16 %v687, %v686
    %v697 = vpack.c.bf16 %v689, %v688
    %698 = vmatprep.subr.bf16.mxu0 0
    %699 = vmatpush1.bf16.msra.mxu0 %v690
    %700 = vmatprep.subr.bf16.mxu0 0
    %701 = vmatpush1.bf16.msra.mxu0 %v691
    %702 = vmatprep.subr.bf16.mxu0 0
    %703 = vmatpush1.bf16.msra.mxu0 %v692
    %704 = vmatprep.subr.bf16.mxu0 0
    %705 = vmatpush1.bf16.msra.mxu0 %v693
    %706 = vmatprep.subr.bf16.mxu0 0
    %707 = vmatpush1.bf16.msra.mxu0 %v694
    %708 = vmatprep.subr.bf16.mxu0 0
    %709 = vmatpush1.bf16.msra.mxu0 %v695
    %710 = vmatprep.subr.bf16.mxu0 0
    %711 = vmatpush1.bf16.msra.mxu0 %v696
    %712 = vmatprep.subr.bf16.mxu0 0
    %713 = vmatpush1.bf16.msra.mxu0 %v697
    %714 = vmatprep.subr.bf16.mxu0 0
    %715 = vmatpush1.bf16.msra.mxu0 0
    %716 = vmatprep.subr.bf16.mxu0 0
    %717 = vmatpush1.bf16.msra.mxu0 0
    %718 = vmatprep.subr.bf16.mxu0 0
    %719 = vmatpush1.bf16.msra.mxu0 0
    %720 = vmatprep.subr.bf16.mxu0 0
    %721 = vmatpush1.bf16.msra.mxu0 0
    %722 = vmatprep.subr.bf16.mxu0 0
    %723 = vmatpush1.bf16.msra.mxu0 0
    %724 = vmatprep.subr.bf16.mxu0 0
    %725 = vmatpush1.bf16.msra.mxu0 0
    %726 = vmatprep.subr.bf16.mxu0 0
    %727 = vmatpush1.bf16.msra.mxu0 0
    %728 = vmatprep.subr.bf16.mxu0 0
    %729 = vmatpush1.bf16.msra.mxu0 0
    %730 = vmatprep.mubr.bf16.mxu0 0
    %731 = vmatmul.mubr.bf16.gmra.mrb[0].mxu0 %v177
    %v732 = vpop.f32.mrb[0].mxu0
    %v733 = vadd.f32 0.0, %v732
    %v734 = vpop.f32.mrb[0].mxu0
    %v735 = vpop.f32.mrb[0].mxu0
    %v736 = vadd.f32 0.0, %v735
    %v737 = vpop.f32.mrb[0].mxu0
    %738 = vmatprep.mubr.bf16.mxu0 0
    %739 = vmatmul.mubr.bf16.gmra.mrb[0].mxu0 %v178
    %v740 = vpop.f32.mrb[0].mxu0
    %v741 = vadd.f32 0.0, %v740
    %v742 = vpop.f32.mrb[0].mxu0
    %v743 = vpop.f32.mrb[0].mxu0
    %v744 = vadd.f32 0.0, %v743
    %v745 = vpop.f32.mrb[0].mxu0
    %746 = vmatprep.mubr.bf16.mxu0 0
    %747 = vmatmul.mubr.bf16.gmra.mrb[0].mxu0 %v179
    %v748 = vpop.f32.mrb[0].mxu0
    %v749 = vadd.f32 0.0, %v748
    %v750 = vpop.f32.mrb[0].mxu0
    %v751 = vpop.f32.mrb[0].mxu0
    %v752 = vadd.f32 0.0, %v751
    %v753 = vpop.f32.mrb[0].mxu0
    %754 = vmatprep.mubr.bf16.mxu0 0
    %755 = vmatmul.mubr.bf16.gmra.mrb[0].mxu0 %v180
    %v756 = vpop.f32.mrb[0].mxu0
    %v757 = vadd.f32 0.0, %v756
    %v758 = vpop.f32.mrb[0].mxu0
    %v759 = vpop.f32.mrb[0].mxu0
    %v760 = vadd.f32 0.0, %v759
    %v761 = vpop.f32.mrb[0].mxu0
    %762 = vmatprep.mubr.bf16.mxu0 0
    %763 = vmatmul.mubr.bf16.gmra.mrb[0].mxu0 %v181
    %v764 = vpop.f32.mrb[0].mxu0
    %v765 = vadd.f32 0.0, %v764
    %v766 = vpop.f32.mrb[0].mxu0
    %v767 = vpop.f32.mrb[0].mxu0
    %v768 = vadd.f32 0.0, %v767
    %v769 = vpop.f32.mrb[0].mxu0
    %770 = vmatprep.mubr.bf16.mxu0 0
    %771 = vmatmul.mubr.bf16.gmra.mrb[0].mxu0 %v182
    %v772 = vpop.f32.mrb[0].mxu0
    %v773 = vadd.f32 0.0, %v772
    %v774 = vpop.f32.mrb[0].mxu0
    %v775 = vpop.f32.mrb[0].mxu0
    %v776 = vadd.f32 0.0, %v775
    %v777 = vpop.f32.mrb[0].mxu0
    %778 = vmatprep.mubr.bf16.mxu0 0
    %779 = vmatmul.mubr.bf16.gmra.mrb[0].mxu0 %v183
    %v780 = vpop.f32.mrb[0].mxu0
    %v781 = vadd.f32 0.0, %v780
    %v782 = vpop.f32.mrb[0].mxu0
    %v783 = vpop.f32.mrb[0].mxu0
    %v784 = vadd.f32 0.0, %v783
    %v785 = vpop.f32.mrb[0].mxu0
    %786 = vmatprep.mubr.bf16.mxu0 0
    %787 = vmatmul.mubr.bf16.gmra.mrb[0].mxu0 %v184
    %v788 = vpop.f32.mrb[0].mxu0
    %v789 = vadd.f32 0.0, %v788
    %v790 = vpop.f32.mrb[0].mxu0
    %v791 = vpop.f32.mrb[0].mxu0
    %v792 = vadd.f32 0.0, %v791
    %v793 = vpop.f32.mrb[0].mxu0
    %794 = vdwg.mxu0
    %v795 = vmul.f32 %v733, %v341
    %v796 = vmul.f32 %v736, %v346
    %v797 = vmul.f32 %v741, %v351
    %v798 = vmul.f32 %v744, %v356
    %v799 = vmul.f32 %v749, %v361
    %v800 = vmul.f32 %v752, %v366
    %v801 = vmul.f32 %v757, %v371
    %v802 = vmul.f32 %v760, %v376
    %v803 = vmul.f32 %v765, %v381
    %v804 = vmul.f32 %v768, %v386
    %v805 = vmul.f32 %v773, %v391
    %v806 = vmul.f32 %v776, %v396
    %v807 = vmul.f32 %v781, %v401
    %v808 = vmul.f32 %v784, %v406
    %v809 = vmul.f32 %v789, %v411
    %v810 = vmul.f32 %v792, %v416
    %v811 = vpack.c.bf16 %v796, %v795
    %v812 = vpack.c.bf16 %v798, %v797
    %v813 = vpack.c.bf16 %v800, %v799
    %v814 = vpack.c.bf16 %v802, %v801
    %v815 = vpack.c.bf16 %v804, %v803
    %v816 = vpack.c.bf16 %v806, %v805
    %v817 = vpack.c.bf16 %v808, %v807
    %v818 = vpack.c.bf16 %v810, %v809
    %v819 = vld [vmem:[%s5] sm:$0xf]
    %v820 = vld [vmem:[%s5 + $0x4] sm:$0xf]
    %v821 = vld [vmem:[%s5 + $0x8] sm:$0xf]
    %v822 = vld [vmem:[%s5 + $0xc] sm:$0xf]
    %v823 = vld [vmem:[%s5 + $0x10] sm:$0xf]
    %v824 = vld [vmem:[%s5 + $0x14] sm:$0xf]
    %v825 = vld [vmem:[%s5 + $0x18] sm:$0xf]
    %v826 = vld [vmem:[%s5 + $0x1c] sm:$0xf]
    %v827 = vld [vmem:[%s5 + $0x20] sm:$0xf]
    %v828 = vld [vmem:[%s5 + $0x24] sm:$0xf]
    %v829 = vld [vmem:[%s5 + $0x28] sm:$0xf]
    %v830 = vld [vmem:[%s5 + $0x2c] sm:$0xf]
    %v831 = vld [vmem:[%s5 + $0x30] sm:$0xf]
    %v832 = vld [vmem:[%s5 + $0x34] sm:$0xf]
    %v833 = vld [vmem:[%s5 + $0x38] sm:$0xf]
    %v834 = vld [vmem:[%s5 + $0x3c] sm:$0xf]
    %v835 = vld [vmem:[%s5 + $0x40] sm:$0xf]
    %v836 = vld [vmem:[%s5 + $0x44] sm:$0xf]
    %v837 = vld [vmem:[%s5 + $0x48] sm:$0xf]
    %v838 = vld [vmem:[%s5 + $0x4c] sm:$0xf]
    %v839 = vld [vmem:[%s5 + $0x50] sm:$0xf]
    %v840 = vld [vmem:[%s5 + $0x54] sm:$0xf]
    %v841 = vld [vmem:[%s5 + $0x58] sm:$0xf]
    %v842 = vld [vmem:[%s5 + $0x5c] sm:$0xf]
    %v843 = vld [vmem:[%s5 + $0x60] sm:$0xf]
    %v844 = vld [vmem:[%s5 + $0x64] sm:$0xf]
    %v845 = vld [vmem:[%s5 + $0x68] sm:$0xf]
    %v846 = vld [vmem:[%s5 + $0x6c] sm:$0xf]
    %v847 = vld [vmem:[%s5 + $0x70] sm:$0xf]
    %v848 = vld [vmem:[%s5 + $0x74] sm:$0xf]
    %v849 = vld [vmem:[%s5 + $0x78] sm:$0xf]
    %v850 = vld [vmem:[%s5 + $0x7c] sm:$0xf]
    %v851 = vld [vmem:[#allocation9] sm:$0x1]
    %v853 = vlaneseq
    %v854 = vshrl.u32 %v853, 7
    %v855 = vsub.s32 0, %v854
    %v856 = vrot.slane %v851, %v855
    %v890 = vunpack.c.l.b16 %v819
    %v891 = vunpack.c.l.b16 %v820
    %v892 = vunpack.c.l.b16 %v821
    %v893 = vunpack.c.l.b16 %v822
    %v894 = vunpack.c.l.b16 %v823
    %v895 = vunpack.c.l.b16 %v824
    %v896 = vunpack.c.l.b16 %v825
    %v897 = vunpack.c.l.b16 %v826
    %v898 = vunpack.c.l.b16 %v827
    %v899 = vunpack.c.l.b16 %v828
    %v900 = vunpack.c.l.b16 %v829
    %v901 = vunpack.c.l.b16 %v830
    %v902 = vunpack.c.l.b16 %v831
    %v903 = vunpack.c.l.b16 %v832
    %v904 = vunpack.c.l.b16 %v833
    %v905 = vunpack.c.l.b16 %v834
    %v906 = vunpack.c.l.b16 %v835
    %v907 = vunpack.c.l.b16 %v836
    %v908 = vunpack.c.l.b16 %v837
    %v909 = vunpack.c.l.b16 %v838
    %v910 = vunpack.c.l.b16 %v839
    %v911 = vunpack.c.l.b16 %v840
    %v912 = vunpack.c.l.b16 %v841
    %v913 = vunpack.c.l.b16 %v842
    %v914 = vunpack.c.l.b16 %v843
    %v915 = vunpack.c.l.b16 %v844
    %v916 = vunpack.c.l.b16 %v845
    %v917 = vunpack.c.l.b16 %v846
    %v918 = vunpack.c.l.b16 %v847
    %v919 = vunpack.c.l.b16 %v848
    %v920 = vunpack.c.l.b16 %v849
    %v921 = vunpack.c.l.b16 %v850
    %v922 = vpack.c.b16 %v891, %v890
    %v923 = vpack.c.b16 %v893, %v892
    %v924 = vpack.c.b16 %v895, %v894
    %v925 = vpack.c.b16 %v897, %v896
    %v926 = vpack.c.b16 %v899, %v898
    %v927 = vpack.c.b16 %v901, %v900
    %v928 = vpack.c.b16 %v903, %v902
    %v929 = vpack.c.b16 %v905, %v904
    %v930 = vpack.c.b16 %v907, %v906
    %v931 = vpack.c.b16 %v909, %v908
    %v932 = vpack.c.b16 %v911, %v910
    %v933 = vpack.c.b16 %v913, %v912
    %v934 = vpack.c.b16 %v915, %v914
    %v935 = vpack.c.b16 %v917, %v916
    %v936 = vpack.c.b16 %v919, %v918
    %v937 = vpack.c.b16 %v921, %v920
    %954 = vmatprep.subr.bf16.mxu0 0
    %955 = vmatpush1.bf16.msra.mxu0 %v922
    %956 = vmatprep.subr.bf16.mxu0 0
    %957 = vmatpush1.bf16.msra.mxu0 %v923
    %958 = vmatprep.subr.bf16.mxu0 0
    %959 = vmatpush1.bf16.msra.mxu0 %v924
    %960 = vmatprep.subr.bf16.mxu0 0
    %961 = vmatpush1.bf16.msra.mxu0 %v925
    %962 = vmatprep.subr.bf16.mxu0 0
    %963 = vmatpush1.bf16.msra.mxu0 %v926
    %964 = vmatprep.subr.bf16.mxu0 0
    %965 = vmatpush1.bf16.msra.mxu0 %v927
    %966 = vmatprep.subr.bf16.mxu0 0
    %967 = vmatpush1.bf16.msra.mxu0 %v928
    %968 = vmatprep.subr.bf16.mxu0 0
    %969 = vmatpush1.bf16.msra.mxu0 %v929
    %970 = vmatprep.subr.bf16.mxu0 0
    %971 = vmatpush1.bf16.msra.mxu0 %v930
    %972 = vmatprep.subr.bf16.mxu0 0
    %973 = vmatpush1.bf16.msra.mxu0 %v931
    %974 = vmatprep.subr.bf16.mxu0 0
    %975 = vmatpush1.bf16.msra.mxu0 %v932
    %976 = vmatprep.subr.bf16.mxu0 0
    %977 = vmatpush1.bf16.msra.mxu0 %v933
    %978 = vmatprep.subr.bf16.mxu0 0
    %979 = vmatpush1.bf16.msra.mxu0 %v934
    %980 = vmatprep.subr.bf16.mxu0 0
    %981 = vmatpush1.bf16.msra.mxu0 %v935
    %982 = vmatprep.subr.bf16.mxu0 0
    %983 = vmatpush1.bf16.msra.mxu0 %v936
    %984 = vmatprep.subr.bf16.mxu0 0
    %985 = vmatpush1.bf16.msra.mxu0 %v937
    %986 = vmatprep.mubr.bf16.mxu0 %v690
    %987 = vmatmul.mubr.bf16.gmra.mrb[0].mxu0 %v811
    %v988 = vpop.f32.mrb[0].mxu0
    %v989 = vadd.f32 %v856, %v988
    %v990 = vpop.f32.mrb[0].mxu0
    %v991 = vpop.f32.mrb[0].mxu0
    %v992 = vadd.f32 %v856, %v991
    %v993 = vpop.f32.mrb[0].mxu0
    %994 = vmatprep.mubr.bf16.mxu0 %v691
    %995 = vmatmul.mubr.bf16.gmra.mrb[0].mxu0 %v812
    %v996 = vpop.f32.mrb[0].mxu0
    %v997 = vadd.f32 %v856, %v996
    %v998 = vpop.f32.mrb[0].mxu0
    %v999 = vpop.f32.mrb[0].mxu0
    %v1000 = vadd.f32 %v856, %v999
    %v1001 = vpop.f32.mrb[0].mxu0
    %1002 = vmatprep.mubr.bf16.mxu0 %v692
    %1003 = vmatmul.mubr.bf16.gmra.mrb[0].mxu0 %v813
    %v1004 = vpop.f32.mrb[0].mxu0
    %v1005 = vadd.f32 %v856, %v1004
    %v1006 = vpop.f32.mrb[0].mxu0
    %v1007 = vpop.f32.mrb[0].mxu0
    %v1008 = vadd.f32 %v856, %v1007
    %v1009 = vpop.f32.mrb[0].mxu0
    %1010 = vmatprep.mubr.bf16.mxu0 %v693
    %1011 = vmatmul.mubr.bf16.gmra.mrb[0].mxu0 %v814
    %v1012 = vpop.f32.mrb[0].mxu0
    %v1013 = vadd.f32 %v856, %v1012
    %v1014 = vpop.f32.mrb[0].mxu0
    %v1015 = vpop.f32.mrb[0].mxu0
    %v1016 = vadd.f32 %v856, %v1015
    %v1017 = vpop.f32.mrb[0].mxu0
    %1018 = vmatprep.mubr.bf16.mxu0 %v694
    %1019 = vmatmul.mubr.bf16.gmra.mrb[0].mxu0 %v815
    %v1020 = vpop.f32.mrb[0].mxu0
    %v1021 = vadd.f32 %v856, %v1020
    %v1022 = vpop.f32.mrb[0].mxu0
    %v1023 = vpop.f32.mrb[0].mxu0
    %v1024 = vadd.f32 %v856, %v1023
    %v1025 = vpop.f32.mrb[0].mxu0
    %1026 = vmatprep.mubr.bf16.mxu0 %v695
    %1027 = vmatmul.mubr.bf16.gmra.mrb[0].mxu0 %v816
    %v1028 = vpop.f32.mrb[0].mxu0
    %v1029 = vadd.f32 %v856, %v1028
    %v1030 = vpop.f32.mrb[0].mxu0
    %v1031 = vpop.f32.mrb[0].mxu0
    %v1032 = vadd.f32 %v856, %v1031
    %v1033 = vpop.f32.mrb[0].mxu0
    %1034 = vmatprep.mubr.bf16.mxu0 %v696
    %1035 = vmatmul.mubr.bf16.gmra.mrb[0].mxu0 %v817
    %v1036 = vpop.f32.mrb[0].mxu0
    %v1037 = vadd.f32 %v856, %v1036
    %v1038 = vpop.f32.mrb[0].mxu0
    %v1039 = vpop.f32.mrb[0].mxu0
    %v1040 = vadd.f32 %v856, %v1039
    %v1041 = vpop.f32.mrb[0].mxu0
    %1042 = vmatprep.mubr.bf16.mxu0 %v697
    %1043 = vmatmul.mubr.bf16.gmra.mrb[0].mxu0 %v818
    %v1044 = vpop.f32.mrb[0].mxu0
    %v1045 = vadd.f32 %v856, %v1044
    %v1046 = vpop.f32.mrb[0].mxu0
    %v1047 = vpop.f32.mrb[0].mxu0
    %v1048 = vadd.f32 %v856, %v1047
    %v1049 = vpop.f32.mrb[0].mxu0
    %1050 = vdwg.mxu0
    %v1051 = vmax.f32 %v989, 0.0
    %v1052 = vmax.f32 %v992, 0.0
    %v1053 = vmax.f32 %v997, 0.0
    %v1054 = vmax.f32 %v1000, 0.0
    %v1055 = vmax.f32 %v1005, 0.0
    %v1056 = vmax.f32 %v1008, 0.0
    %v1057 = vmax.f32 %v1013, 0.0
    %v1058 = vmax.f32 %v1016, 0.0
    %v1059 = vmax.f32 %v1021, 0.0
    %v1060 = vmax.f32 %v1024, 0.0
    %v1061 = vmax.f32 %v1029, 0.0
    %v1062 = vmax.f32 %v1032, 0.0
    %v1063 = vmax.f32 %v1037, 0.0
    %v1064 = vmax.f32 %v1040, 0.0
    %v1065 = vmax.f32 %v1045, 0.0
    %v1066 = vmax.f32 %v1048, 0.0
    %v1067 = vpack.c.bf16 %v1052, %v1051
    %v1068 = vpack.c.bf16 %v1054, %v1053
    %v1069 = vpack.c.bf16 %v1056, %v1055
    %v1070 = vpack.c.bf16 %v1058, %v1057
    %v1071 = vpack.c.bf16 %v1060, %v1059
    %v1072 = vpack.c.bf16 %v1062, %v1061
    %v1073 = vpack.c.bf16 %v1064, %v1063
    %v1074 = vpack.c.bf16 %v1066, %v1065
    %1075 = vmatprep.subr.bf16.mxu0 0
    %1076 = vmatpush1.bf16.msra.mxu0 %v1067
    %1077 = vmatprep.subr.bf16.mxu0 0
    %1078 = vmatpush1.bf16.msra.mxu0 %v1068
    %1079 = vmatprep.subr.bf16.mxu0 0
    %1080 = vmatpush1.bf16.msra.mxu0 %v1069
    %1081 = vmatprep.subr.bf16.mxu0 0
    %1082 = vmatpush1.bf16.msra.mxu0 %v1070
    %1083 = vmatprep.subr.bf16.mxu0 0
    %1084 = vmatpush1.bf16.msra.mxu0 %v1071
    %1085 = vmatprep.subr.bf16.mxu0 0
    %1086 = vmatpush1.bf16.msra.mxu0 %v1072
    %1087 = vmatprep.subr.bf16.mxu0 0
    %1088 = vmatpush1.bf16.msra.mxu0 %v1073
    %1089 = vmatprep.subr.bf16.mxu0 0
    %1090 = vmatpush1.bf16.msra.mxu0 %v1074
    %1091 = vmatprep.subr.bf16.mxu0 0
    %1092 = vmatpush1.bf16.msra.mxu0 0
    %1093 = vmatprep.subr.bf16.mxu0 0
    %1094 = vmatpush1.bf16.msra.mxu0 0
    %1095 = vmatprep.subr.bf16.mxu0 0
    %1096 = vmatpush1.bf16.msra.mxu0 0
    %1097 = vmatprep.subr.bf16.mxu0 0
    %1098 = vmatpush1.bf16.msra.mxu0 0
    %1099 = vmatprep.subr.bf16.mxu0 0
    %1100 = vmatpush1.bf16.msra.mxu0 0
    %1101 = vmatprep.subr.bf16.mxu0 0
    %1102 = vmatpush1.bf16.msra.mxu0 0
    %1103 = vmatprep.subr.bf16.mxu0 0
    %1104 = vmatpush1.bf16.msra.mxu0 0
    %1105 = vmatprep.subr.bf16.mxu0 0
    %1106 = vmatpush1.bf16.msra.mxu0 0
    %1107 = vmatprep.mubr.bf16.mxu0 0
    %1108 = vmatmul.mubr.bf16.gmra.mrb[0].mxu0 %v177
    %v1109 = vpop.f32.mrb[0].mxu0
    %v1110 = vadd.f32 0.0, %v1109
    %v1111 = vpop.f32.mrb[0].mxu0
    %v1112 = vpop.f32.mrb[0].mxu0
    %v1113 = vadd.f32 0.0, %v1112
    %v1114 = vpop.f32.mrb[0].mxu0
    %1115 = vmatprep.mubr.bf16.mxu0 0
    %1116 = vmatmul.mubr.bf16.gmra.mrb[0].mxu0 %v178
    %v1117 = vpop.f32.mrb[0].mxu0
    %v1118 = vadd.f32 0.0, %v1117
    %v1119 = vpop.f32.mrb[0].mxu0
    %v1120 = vpop.f32.mrb[0].mxu0
    %v1121 = vadd.f32 0.0, %v1120
    %v1122 = vpop.f32.mrb[0].mxu0
    %1123 = vmatprep.mubr.bf16.mxu0 0
    %1124 = vmatmul.mubr.bf16.gmra.mrb[0].mxu0 %v179
    %v1125 = vpop.f32.mrb[0].mxu0
    %v1126 = vadd.f32 0.0, %v1125
    %v1127 = vpop.f32.mrb[0].mxu0
    %v1128 = vpop.f32.mrb[0].mxu0
    %v1129 = vadd.f32 0.0, %v1128
    %v1130 = vpop.f32.mrb[0].mxu0
    %1131 = vmatprep.mubr.bf16.mxu0 0
    %1132 = vmatmul.mubr.bf16.gmra.mrb[0].mxu0 %v180
    %v1133 = vpop.f32.mrb[0].mxu0
    %v1134 = vadd.f32 0.0, %v1133
    %v1135 = vpop.f32.mrb[0].mxu0
    %v1136 = vpop.f32.mrb[0].mxu0
    %v1137 = vadd.f32 0.0, %v1136
    %v1138 = vpop.f32.mrb[0].mxu0
    %1139 = vmatprep.mubr.bf16.mxu0 0
    %1140 = vmatmul.mubr.bf16.gmra.mrb[0].mxu0 %v181
    %v1141 = vpop.f32.mrb[0].mxu0
    %v1142 = vadd.f32 0.0, %v1141
    %v1143 = vpop.f32.mrb[0].mxu0
    %v1144 = vpop.f32.mrb[0].mxu0
    %v1145 = vadd.f32 0.0, %v1144
    %v1146 = vpop.f32.mrb[0].mxu0
    %1147 = vmatprep.mubr.bf16.mxu0 0
    %1148 = vmatmul.mubr.bf16.gmra.mrb[0].mxu0 %v182
    %v1149 = vpop.f32.mrb[0].mxu0
    %v1150 = vadd.f32 0.0, %v1149
    %v1151 = vpop.f32.mrb[0].mxu0
    %v1152 = vpop.f32.mrb[0].mxu0
    %v1153 = vadd.f32 0.0, %v1152
    %v1154 = vpop.f32.mrb[0].mxu0
    %1155 = vmatprep.mubr.bf16.mxu0 0
    %1156 = vmatmul.mubr.bf16.gmra.mrb[0].mxu0 %v183
    %v1157 = vpop.f32.mrb[0].mxu0
    %v1158 = vadd.f32 0.0, %v1157
    %v1159 = vpop.f32.mrb[0].mxu0
    %v1160 = vpop.f32.mrb[0].mxu0
    %v1161 = vadd.f32 0.0, %v1160
    %v1162 = vpop.f32.mrb[0].mxu0
    %1163 = vmatprep.mubr.bf16.mxu0 0
    %1164 = vmatmul.mubr.bf16.gmra.mrb[0].mxu0 %v184
    %v1165 = vpop.f32.mrb[0].mxu0
    %v1166 = vadd.f32 0.0, %v1165
    %v1167 = vpop.f32.mrb[0].mxu0
    %v1168 = vpop.f32.mrb[0].mxu0
    %v1169 = vadd.f32 0.0, %v1168
    %v1170 = vpop.f32.mrb[0].mxu0
    %1171 = vdwg.mxu0
    %v1172 = vmul.f32 %v1110, %v341
    %v1173 = vmul.f32 %v1113, %v346
    %v1174 = vmul.f32 %v1118, %v351
    %v1175 = vmul.f32 %v1121, %v356
    %v1176 = vmul.f32 %v1126, %v361
    %v1177 = vmul.f32 %v1129, %v366
    %v1178 = vmul.f32 %v1134, %v371
    %v1179 = vmul.f32 %v1137, %v376
    %v1180 = vmul.f32 %v1142, %v381
    %v1181 = vmul.f32 %v1145, %v386
    %v1182 = vmul.f32 %v1150, %v391
    %v1183 = vmul.f32 %v1153, %v396
    %v1184 = vmul.f32 %v1158, %v401
    %v1185 = vmul.f32 %v1161, %v406
    %v1186 = vmul.f32 %v1166, %v411
    %v1187 = vmul.f32 %v1169, %v416
    %v1188 = vpack.c.bf16 %v1173, %v1172
    %v1189 = vpack.c.bf16 %v1175, %v1174
    %v1190 = vpack.c.bf16 %v1177, %v1176
    %v1191 = vpack.c.bf16 %v1179, %v1178
    %v1192 = vpack.c.bf16 %v1181, %v1180
    %v1193 = vpack.c.bf16 %v1183, %v1182
    %v1194 = vpack.c.bf16 %v1185, %v1184
    %v1195 = vpack.c.bf16 %v1187, %v1186
    %v1196 = vld [vmem:[%s7] sm:$0xf]
    %v1197 = vld [vmem:[%s7 + $0x4] sm:$0xf]
    %v1198 = vld [vmem:[%s7 + $0x8] sm:$0xf]
    %v1199 = vld [vmem:[%s7 + $0xc] sm:$0xf]
    %v1200 = vld [vmem:[%s7 + $0x10] sm:$0xf]
    %v1201 = vld [vmem:[%s7 + $0x14] sm:$0xf]
    %v1202 = vld [vmem:[%s7 + $0x18] sm:$0xf]
    %v1203 = vld [vmem:[%s7 + $0x1c] sm:$0xf]
    %v1204 = vld [vmem:[%s7 + $0x20] sm:$0xf]
    %v1205 = vld [vmem:[%s7 + $0x24] sm:$0xf]
    %v1206 = vld [vmem:[%s7 + $0x28] sm:$0xf]
    %v1207 = vld [vmem:[%s7 + $0x2c] sm:$0xf]
    %v1208 = vld [vmem:[%s7 + $0x30] sm:$0xf]
    %v1209 = vld [vmem:[%s7 + $0x34] sm:$0xf]
    %v1210 = vld [vmem:[%s7 + $0x38] sm:$0xf]
    %v1211 = vld [vmem:[%s7 + $0x3c] sm:$0xf]
    %v1212 = vld [vmem:[%s7 + $0x40] sm:$0xf]
    %v1213 = vld [vmem:[%s7 + $0x44] sm:$0xf]
    %v1214 = vld [vmem:[%s7 + $0x48] sm:$0xf]
    %v1215 = vld [vmem:[%s7 + $0x4c] sm:$0xf]
    %v1216 = vld [vmem:[%s7 + $0x50] sm:$0xf]
    %v1217 = vld [vmem:[%s7 + $0x54] sm:$0xf]
    %v1218 = vld [vmem:[%s7 + $0x58] sm:$0xf]
    %v1219 = vld [vmem:[%s7 + $0x5c] sm:$0xf]
    %v1220 = vld [vmem:[%s7 + $0x60] sm:$0xf]
    %v1221 = vld [vmem:[%s7 + $0x64] sm:$0xf]
    %v1222 = vld [vmem:[%s7 + $0x68] sm:$0xf]
    %v1223 = vld [vmem:[%s7 + $0x6c] sm:$0xf]
    %v1224 = vld [vmem:[%s7 + $0x70] sm:$0xf]
    %v1225 = vld [vmem:[%s7 + $0x74] sm:$0xf]
    %v1226 = vld [vmem:[%s7 + $0x78] sm:$0xf]
    %v1227 = vld [vmem:[%s7 + $0x7c] sm:$0xf]
    %v1228 = vld [vmem:[%s8] sm:$0x1]
    %v1230 = vlaneseq
    %v1231 = vshrl.u32 %v1230, 7
    %v1232 = vsub.s32 0, %v1231
    %v1233 = vrot.slane %v1228, %v1232
    %v1267 = vunpack.c.l.b16 %v1196
    %v1268 = vunpack.c.l.b16 %v1197
    %v1269 = vunpack.c.l.b16 %v1198
    %v1270 = vunpack.c.l.b16 %v1199
    %v1271 = vunpack.c.l.b16 %v1200
    %v1272 = vunpack.c.l.b16 %v1201
    %v1273 = vunpack.c.l.b16 %v1202
    %v1274 = vunpack.c.l.b16 %v1203
    %v1275 = vunpack.c.l.b16 %v1204
    %v1276 = vunpack.c.l.b16 %v1205
    %v1277 = vunpack.c.l.b16 %v1206
    %v1278 = vunpack.c.l.b16 %v1207
    %v1279 = vunpack.c.l.b16 %v1208
    %v1280 = vunpack.c.l.b16 %v1209
    %v1281 = vunpack.c.l.b16 %v1210
    %v1282 = vunpack.c.l.b16 %v1211
    %v1283 = vunpack.c.l.b16 %v1212
    %v1284 = vunpack.c.l.b16 %v1213
    %v1285 = vunpack.c.l.b16 %v1214
    %v1286 = vunpack.c.l.b16 %v1215
    %v1287 = vunpack.c.l.b16 %v1216
    %v1288 = vunpack.c.l.b16 %v1217
    %v1289 = vunpack.c.l.b16 %v1218
    %v1290 = vunpack.c.l.b16 %v1219
    %v1291 = vunpack.c.l.b16 %v1220
    %v1292 = vunpack.c.l.b16 %v1221
    %v1293 = vunpack.c.l.b16 %v1222
    %v1294 = vunpack.c.l.b16 %v1223
    %v1295 = vunpack.c.l.b16 %v1224
    %v1296 = vunpack.c.l.b16 %v1225
    %v1297 = vunpack.c.l.b16 %v1226
    %v1298 = vunpack.c.l.b16 %v1227
    %v1299 = vpack.c.b16 %v1268, %v1267
    %v1300 = vpack.c.b16 %v1270, %v1269
    %v1301 = vpack.c.b16 %v1272, %v1271
    %v1302 = vpack.c.b16 %v1274, %v1273
    %v1303 = vpack.c.b16 %v1276, %v1275
    %v1304 = vpack.c.b16 %v1278, %v1277
    %v1305 = vpack.c.b16 %v1280, %v1279
    %v1306 = vpack.c.b16 %v1282, %v1281
    %v1307 = vpack.c.b16 %v1284, %v1283
    %v1308 = vpack.c.b16 %v1286, %v1285
    %v1309 = vpack.c.b16 %v1288, %v1287
    %v1310 = vpack.c.b16 %v1290, %v1289
    %v1311 = vpack.c.b16 %v1292, %v1291
    %v1312 = vpack.c.b16 %v1294, %v1293
    %v1313 = vpack.c.b16 %v1296, %v1295
    %v1314 = vpack.c.b16 %v1298, %v1297
    %1331 = vmatprep.subr.bf16.mxu0 0
    %1332 = vmatpush1.bf16.msra.mxu0 %v1299
    %1333 = vmatprep.subr.bf16.mxu0 0
    %1334 = vmatpush1.bf16.msra.mxu0 %v1300
    %1335 = vmatprep.subr.bf16.mxu0 0
    %1336 = vmatpush1.bf16.msra.mxu0 %v1301
    %1337 = vmatprep.subr.bf16.mxu0 0
    %1338 = vmatpush1.bf16.msra.mxu0 %v1302
    %1339 = vmatprep.subr.bf16.mxu0 0
    %1340 = vmatpush1.bf16.msra.mxu0 %v1303
    %1341 = vmatprep.subr.bf16.mxu0 0
    %1342 = vmatpush1.bf16.msra.mxu0 %v1304
    %1343 = vmatprep.subr.bf16.mxu0 0
    %1344 = vmatpush1.bf16.msra.mxu0 %v1305
    %1345 = vmatprep.subr.bf16.mxu0 0
    %1346 = vmatpush1.bf16.msra.mxu0 %v1306
    %1347 = vmatprep.subr.bf16.mxu0 0
    %1348 = vmatpush1.bf16.msra.mxu0 %v1307
    %1349 = vmatprep.subr.bf16.mxu0 0
    %1350 = vmatpush1.bf16.msra.mxu0 %v1308
    %1351 = vmatprep.subr.bf16.mxu0 0
    %1352 = vmatpush1.bf16.msra.mxu0 %v1309
    %1353 = vmatprep.subr.bf16.mxu0 0
    %1354 = vmatpush1.bf16.msra.mxu0 %v1310
    %1355 = vmatprep.subr.bf16.mxu0 0
    %1356 = vmatpush1.bf16.msra.mxu0 %v1311
    %1357 = vmatprep.subr.bf16.mxu0 0
    %1358 = vmatpush1.bf16.msra.mxu0 %v1312
    %1359 = vmatprep.subr.bf16.mxu0 0
    %1360 = vmatpush1.bf16.msra.mxu0 %v1313
    %1361 = vmatprep.subr.bf16.mxu0 0
    %1362 = vmatpush1.bf16.msra.mxu0 %v1314
    %1363 = vmatprep.mubr.bf16.mxu0 %v1067
    %1364 = vmatmul.mubr.bf16.gmra.mrb[0].mxu0 %v1188
    %v1365 = vpop.f32.mrb[0].mxu0
    %v1366 = vadd.f32 %v1233, %v1365
    %v1367 = vpop.f32.mrb[0].mxu0
    %v1368 = vpop.f32.mrb[0].mxu0
    %v1369 = vadd.f32 %v1233, %v1368
    %v1370 = vpop.f32.mrb[0].mxu0
    %1371 = vmatprep.mubr.bf16.mxu0 %v1068
    %1372 = vmatmul.mubr.bf16.gmra.mrb[0].mxu0 %v1189
    %v1373 = vpop.f32.mrb[0].mxu0
    %v1374 = vadd.f32 %v1233, %v1373
    %v1375 = vpop.f32.mrb[0].mxu0
    %v1376 = vpop.f32.mrb[0].mxu0
    %v1377 = vadd.f32 %v1233, %v1376
    %v1378 = vpop.f32.mrb[0].mxu0
    %1379 = vmatprep.mubr.bf16.mxu0 %v1069
    %1380 = vmatmul.mubr.bf16.gmra.mrb[0].mxu0 %v1190
    %v1381 = vpop.f32.mrb[0].mxu0
    %v1382 = vadd.f32 %v1233, %v1381
    %v1383 = vpop.f32.mrb[0].mxu0
    %v1384 = vpop.f32.mrb[0].mxu0
    %v1385 = vadd.f32 %v1233, %v1384
    %v1386 = vpop.f32.mrb[0].mxu0
    %1387 = vmatprep.mubr.bf16.mxu0 %v1070
    %1388 = vmatmul.mubr.bf16.gmra.mrb[0].mxu0 %v1191
    %v1389 = vpop.f32.mrb[0].mxu0
    %v1390 = vadd.f32 %v1233, %v1389
    %v1391 = vpop.f32.mrb[0].mxu0
    %v1392 = vpop.f32.mrb[0].mxu0
    %v1393 = vadd.f32 %v1233, %v1392
    %v1394 = vpop.f32.mrb[0].mxu0
    %1395 = vmatprep.mubr.bf16.mxu0 %v1071
    %1396 = vmatmul.mubr.bf16.gmra.mrb[0].mxu0 %v1192
    %v1397 = vpop.f32.mrb[0].mxu0
    %v1398 = vadd.f32 %v1233, %v1397
    %v1399 = vpop.f32.mrb[0].mxu0
    %v1400 = vpop.f32.mrb[0].mxu0
    %v1401 = vadd.f32 %v1233, %v1400
    %v1402 = vpop.f32.mrb[0].mxu0
    %1403 = vmatprep.mubr.bf16.mxu0 %v1072
    %1404 = vmatmul.mubr.bf16.gmra.mrb[0].mxu0 %v1193
    %v1405 = vpop.f32.mrb[0].mxu0
    %v1406 = vadd.f32 %v1233, %v1405
    %v1407 = vpop.f32.mrb[0].mxu0
    %v1408 = vpop.f32.mrb[0].mxu0
    %v1409 = vadd.f32 %v1233, %v1408
    %v1410 = vpop.f32.mrb[0].mxu0
    %1411 = vmatprep.mubr.bf16.mxu0 %v1073
    %1412 = vmatmul.mubr.bf16.gmra.mrb[0].mxu0 %v1194
    %v1413 = vpop.f32.mrb[0].mxu0
    %v1414 = vadd.f32 %v1233, %v1413
    %v1415 = vpop.f32.mrb[0].mxu0
    %v1416 = vpop.f32.mrb[0].mxu0
    %v1417 = vadd.f32 %v1233, %v1416
    %v1418 = vpop.f32.mrb[0].mxu0
    %1419 = vmatprep.mubr.bf16.mxu0 %v1074
    %1420 = vmatmul.mubr.bf16.gmra.mrb[0].mxu0 %v1195
    %v1421 = vpop.f32.mrb[0].mxu0
    %v1422 = vadd.f32 %v1233, %v1421
    %v1423 = vpop.f32.mrb[0].mxu0
    %v1424 = vpop.f32.mrb[0].mxu0
    %v1425 = vadd.f32 %v1233, %v1424
    %v1426 = vpop.f32.mrb[0].mxu0
    %1427 = vdwg.mxu0
    %1428 = vst [vmem:[%s9] sm:$0xff] %v1366
    %1429 = vst [vmem:[%s9 + $0x8] sm:$0xff] %v1369
    %1430 = vst [vmem:[%s9 + $0x10] sm:$0xff] %v1374
    %1431 = vst [vmem:[%s9 + $0x18] sm:$0xff] %v1377
    %1432 = vst [vmem:[%s9 + $0x20] sm:$0xff] %v1382
    %1433 = vst [vmem:[%s9 + $0x28] sm:$0xff] %v1385
    %1434 = vst [vmem:[%s9 + $0x30] sm:$0xff] %v1390
    %1435 = vst [vmem:[%s9 + $0x38] sm:$0xff] %v1393
    %1436 = vst [vmem:[%s9 + $0x40] sm:$0xff] %v1398
    %1437 = vst [vmem:[%s9 + $0x48] sm:$0xff] %v1401
    %1438 = vst [vmem:[%s9 + $0x50] sm:$0xff] %v1406
    %1439 = vst [vmem:[%s9 + $0x58] sm:$0xff] %v1409
    %1440 = vst [vmem:[%s9 + $0x60] sm:$0xff] %v1414
    %1441 = vst [vmem:[%s9 + $0x68] sm:$0xff] %v1417
    %1442 = vst [vmem:[%s9 + $0x70] sm:$0xff] %v1422
    %1443 = vst [vmem:[%s9 + $0x78] sm:$0xff] %v1425
    // Predicated region
    $region58: #{forward.1} parent=1 // pred_check
      _
    $region59: #{forward.1} parent=1 // pred_check_branch
      %1445 = sbr.rel (0) target = $region61
    $region60: #{forward.1} parent=1 // pred_region
      _
    $region61: #{forward.1} parent=1 // pred_fallthru
      _
    // Predicated region
    $region62: #{forward.1} parent=1 // pred_check
      _
    $region63: #{forward.1} parent=1 // pred_check_branch
      %1447 = sbr.rel (0) target = $region65
    $region64: #{forward.1} parent=1 // pred_region
      _
    $region65: #{forward.1} parent=1 // pred_fallthru
      _
    %1448 = vsyncpa [#allocation3], 1
    %1449 = vsyncpa [#allocation5], 1
    %1450 = vsyncpa [#allocation8], 1

</llo_original>
